<compile_context>
chip_gen: v5e
topology: v5e:2x2
jax: 0.10.0
libtpu: 0.0.40
codegen_flags: <defaults>
</compile_context>

<pallas_src>
import functools

import jax
import jax.numpy as jnp
from jax.experimental import pallas as pl
from jax.experimental.pallas import tpu as pltpu


def _lstm_step_from_gates(g, c, hsz):
    """LSTM pointwise update from pre-activation gates.

    g: (B, 4*hsz) f32, column layout [i | f | o | g_tanh] (sigmoid gates contiguous).
    c: (B, hsz) f32.
    """
    sg = jax.nn.sigmoid(g[:, :3 * hsz])          # one EUP slab for all sigmoid gates
    i = sg[:, 0 * hsz:1 * hsz]
    f = sg[:, 1 * hsz:2 * hsz]
    o = sg[:, 2 * hsz:3 * hsz]
    gg = jnp.tanh(g[:, 3 * hsz:4 * hsz])
    c_new = f * c + i * gg
    h_new = o * jnp.tanh(c_new)
    return h_new, c_new


def lstm_vel_3dpw_kernel(hardtanh_limit,
                         pose_ref, vel_ref,               # (B, T_in, D) f32, native layout
                         w_enc_px_ref, w_enc_vx_ref,      # (D, 8H) bf16 each (input rows)
                         w_enc_h_ref, b_enc_ref,          # (2H, 8H) bf16, (1, 8H) f32
                         w_dec_x_ref, w_dec_h_ref,        # (D, 4H) bf16, (H, 4H) bf16
                         b_dec_ref,                       # (1, 4H) f32
                         w_fc_ref, b_fc_ref,              # (H, D) bf16, (1, D) f32
                         out_ref):                        # (B, T_out*D) f32
    B, T_in, D = pose_ref.shape
    H = w_dec_h_ref.shape[0]
    Hm = 2 * H
    T_out = out_ref.shape[1] // D

    wdt = w_enc_h_ref.dtype
    w_px = w_enc_px_ref[...]
    w_vx = w_enc_vx_ref[...]
    w_h = w_enc_h_ref[...]
    w_dx = w_dec_x_ref[...]
    w_dh = w_dec_h_ref[...]
    w_fc = w_fc_ref[...]

    pose = pose_ref[...]                                   # (B, T_in, D)
    vel = vel_ref[...]

    # Hoisted, pre-broadcast biases (one sublane broadcast each, outside all loops).
    b_enc = jnp.broadcast_to(b_enc_ref[...], (B, 4 * Hm))
    b_dec = jnp.broadcast_to(b_dec_ref[...], (B, 4 * H))
    b_fc = jnp.broadcast_to(b_fc_ref[...], (B, D))

    # ---- encoder input-side gate contributions, fully off the serial chain ----
    # xg[t] = pose_t @ Wx_pose + vel_t @ Wx_vel + bias   (block-diagonal column layout)
    xg = []
    for t in range(T_in):                                  # independent tiny dots; pipeline in MXU
        gp = jnp.dot(pose[:, t, :].astype(wdt), w_px, preferred_element_type=jnp.float32)
        gv = jnp.dot(vel[:, t, :].astype(wdt), w_vx, preferred_element_type=jnp.float32)
        xg.append(gp + gv + b_enc)

    # ---- merged pose+vel encoders: one block-diagonal LSTM of hidden 2H ----
    # h0 == 0 => the first step's recurrent dot is identically zero; skip it.
    h, c = _lstm_step_from_gates(xg[0], jnp.zeros((B, Hm), jnp.float32), Hm)
    for t in range(1, T_in):                               # fully static unroll
        g = jnp.dot(h.astype(wdt), w_h, preferred_element_type=jnp.float32) + xg[t]
        h, c = _lstm_step_from_gates(g, c, Hm)

    # decoder init: sum of pose / vel encoder final states
    h_d = h[:, :H] + h[:, H:]
    c_d = c[:, :H] + c[:, H:]
    x = vel[:, T_in - 1, :]                                # vel[:, -1, :]
    # TODO(synk): nn.Dropout on the decoder input is identity in eval mode; not modeled.

    # ---- autoregressive VelDecoder (nn.LSTMCell + Linear + Hardtanh) ----
    ys = []
    for _ in range(T_out):                                 # fully static unroll
        g = (jnp.dot(x.astype(wdt), w_dx, preferred_element_type=jnp.float32)
             + jnp.dot(h_d.astype(wdt), w_dh, preferred_element_type=jnp.float32)
             + b_dec)
        h_d, c_d = _lstm_step_from_gates(g, c_d, H)
        y = jnp.dot(h_d.astype(wdt), w_fc, preferred_element_type=jnp.float32) + b_fc
        y = jnp.clip(y, -hardtanh_limit, hardtanh_limit)   # Hardtanh
        ys.append(y)
        x = y                                              # autoregressive feedback

    # single lane-dense store instead of T_out masked 16-wide stores
    out_ref[...] = jnp.concatenate(ys, axis=-1).astype(out_ref.dtype)


def lstm_vel_3dpw_forward(params, pose, vel, output_len, hardtanh_limit=1.0):
    """pose, vel: (B, T_in, D) float32 (native layout). Returns [out, out], out: (B, T_out, D)."""
    B, _, D = pose.shape
    kernel = functools.partial(lstm_vel_3dpw_kernel, float(hardtanh_limit))
    vmem = pl.BlockSpec(memory_space=pltpu.MemorySpace.VMEM)

    out_flat = pl.pallas_call(
        kernel,
        out_shape=jax.ShapeDtypeStruct((B, output_len * D), jnp.float32),
        in_specs=[vmem] * 11,
        out_specs=vmem,
    )(pose, vel,
      params["w_enc_px"], params["w_enc_vx"], params["w_enc_h"], params["b_enc"],
      params["w_dec_x"], params["w_dec_h"], params["b_dec"],
      params["w_fc"], params["b_fc"])

    out = out_flat.reshape(B, output_len, D)               # (B, T_out, D)
    return [out, out]                                      # module calls the decoder twice


# ---------------- parameter init / packing (PyTorch layout -> fused layout) ----------------

def init_lstm_params(key, input_size, hidden_size):
    k = 1.0 / float(hidden_size) ** 0.5
    ks = jax.random.split(key, 4)
    w_ih = jax.random.uniform(ks[0], (4 * hidden_size, input_size), jnp.float32, -k, k)
    w_hh = jax.random.uniform(ks[1], (4 * hidden_size, hidden_size), jnp.float32, -k, k)
    b_ih = jax.random.uniform(ks[2], (4 * hidden_size,), jnp.float32, -k, k)
    b_hh = jax.random.uniform(ks[3], (4 * hidden_size,), jnp.float32, -k, k)
    return w_ih, w_hh, b_ih, b_hh


_GATE_ORDER = jnp.array([0, 1, 3, 2])   # PyTorch [i, f, g, o] -> kernel layout [i, f, o, g]


def _per_gate(w_ih, w_hh, b_ih, b_hh, H):
    """PyTorch (4H, Din) layout -> per-gate (4, Din, H)/(4, H, H)/(4, H), order [i, f, o, g]."""
    Din = w_ih.shape[1]
    wih = w_ih.reshape(4, H, Din)[_GATE_ORDER].transpose(0, 2, 1)
    whh = w_hh.reshape(4, H, H)[_GATE_ORDER].transpose(0, 2, 1)
    b = (b_ih + b_hh).reshape(4, H)[_GATE_ORDER]
    return wih, whh, b


def pack_merged_encoders(enc_pose, enc_vel, D, H, dtype=jnp.bfloat16):
    """Block-diagonal merge of the two encoder LSTMs into one LSTM of hidden 2H.

    Split into input-side and hidden-side weights so input projections can be
    precomputed outside the recurrence.
    Columns: gate-major [i, f, o, g], each 2H wide = [pose H | vel H].
    Hidden rows: [h_pose (H) | h_vel (H)]; zero off-diagonal blocks keep the two
    recurrences mathematically independent.
    """
    wih_p, whh_p, b_p = _per_gate(*enc_pose, H)
    wih_v, whh_v, b_v = _per_gate(*enc_vel, H)
    zDH = jnp.zeros((4, D, H), jnp.float32)
    zHH = jnp.zeros((4, H, H), jnp.float32)
    # input projections (pose input only feeds pose gate columns, vel only vel columns)
    w_px = jnp.concatenate([wih_p, zDH], axis=2).transpose(1, 0, 2).reshape(D, 8 * H)
    w_vx = jnp.concatenate([zDH, wih_v], axis=2).transpose(1, 0, 2).reshape(D, 8 * H)
    # block-diagonal recurrent weight (2H, 8H)
    w_h = jnp.concatenate([
        jnp.concatenate([whh_p, zHH], axis=2),   # pose-hidden rows
        jnp.concatenate([zHH, whh_v], axis=2),   # vel-hidden rows
    ], axis=1).transpose(1, 0, 2).reshape(2 * H, 8 * H)
    b = jnp.concatenate([b_p, b_v], axis=1).reshape(1, 8 * H)   # biases stay f32
    return (w_px.astype(dtype), w_vx.astype(dtype), w_h.astype(dtype), b)


def pack_decoder_cell(w_ih, w_hh, b_ih, b_hh, dtype=jnp.bfloat16):
    """nn.LSTMCell weights -> split (D, 4H) / (H, 4H) with gate order [i, f, o, g]."""
    H = w_hh.shape[1]
    wih, whh, b = _per_gate(w_ih, w_hh, b_ih, b_hh, H)
    w_x = wih.transpose(1, 0, 2).reshape(-1, 4 * H).astype(dtype)   # (D, 4H)
    w_h = whh.transpose(1, 0, 2).reshape(H, 4 * H).astype(dtype)    # (H, 4H)
    return w_x, w_h, b.reshape(1, 4 * H)


if __name__ == "__main__":
    # small shapes consistent with the forward: batch=2, input seq=8, feature dim=16,
    # hidden_size=32, predicted frames (output_len)=4
    B, T_IN, D, H, T_OUT = 2, 8, 16, 32, 4

    key = jax.random.PRNGKey(0)
    k_pose, k_vel, k_enc_p, k_enc_v, k_dec, k_fc = jax.random.split(key, 6)

    pose = jax.random.normal(k_pose, (B, T_IN, D), jnp.float32)
    vel = jax.random.normal(k_vel, (B, T_IN, D), jnp.float32)

    enc_p = init_lstm_params(k_enc_p, D, H)
    enc_v = init_lstm_params(k_enc_v, D, H)
    dec = init_lstm_params(k_dec, D, H)

    w_enc_px, w_enc_vx, w_enc_h, b_enc = pack_merged_encoders(enc_p, enc_v, D, H)
    w_dec_x, w_dec_h, b_dec = pack_decoder_cell(*dec)

    kf = 1.0 / float(H) ** 0.5
    kf1, kf2 = jax.random.split(k_fc)
    w_fc = jax.random.uniform(kf1, (D, H), jnp.float32, -kf, kf)   # torch Linear (out, in)
    b_fc = jax.random.uniform(kf2, (D,), jnp.float32, -kf, kf)

    params = {
        "w_enc_px": w_enc_px, "w_enc_vx": w_enc_vx, "w_enc_h": w_enc_h, "b_enc": b_enc,
        "w_dec_x": w_dec_x, "w_dec_h": w_dec_h, "b_dec": b_dec,
        "w_fc": w_fc.T.astype(jnp.bfloat16),     # (H, D)
        "b_fc": b_fc.reshape(1, D),              # (1, D)
    }

    outputs = lstm_vel_3dpw_forward(params, pose, vel, T_OUT, hardtanh_limit=1.0)
    jax.block_until_ready(outputs)
    assert outputs[0].shape == (B, T_OUT, D) and outputs[1].shape == (B, T_OUT, D)
    assert bool(jnp.all(jnp.isfinite(outputs[0])))
    print("KERNEL_OK")
</pallas_src>

<mosaic_0001>
module attributes {stable_mosaic.version = 11 : i64} {
  func.func @lstm_vel_3dpw_kernel(%arg0: memref<2x8x16xf32, #tpu.memory_space<vmem>>, %arg1: memref<2x8x16xf32, #tpu.memory_space<vmem>>, %arg2: memref<16x256xbf16, #tpu.memory_space<vmem>>, %arg3: memref<16x256xbf16, #tpu.memory_space<vmem>>, %arg4: memref<64x256xbf16, #tpu.memory_space<vmem>>, %arg5: memref<1x256xf32, #tpu.memory_space<vmem>>, %arg6: memref<16x128xbf16, #tpu.memory_space<vmem>>, %arg7: memref<32x128xbf16, #tpu.memory_space<vmem>>, %arg8: memref<1x128xf32, #tpu.memory_space<vmem>>, %arg9: memref<32x16xbf16, #tpu.memory_space<vmem>>, %arg10: memref<1x16xf32, #tpu.memory_space<vmem>>, %arg11: memref<2x64xf32, #tpu.memory_space<vmem>>) attributes {dimension_semantics = [], scalar_prefetch = 0 : i64, scratch_operands = 0 : i64, tpu.core_type = #tpu.core_type<tc>} {
    %c0 = arith.constant 0 : index
    %c0_0 = arith.constant 0 : index
    %0 = vector.load %arg2[%c0, %c0_0] : memref<16x256xbf16, #tpu.memory_space<vmem>>, vector<16x256xbf16>
    %c0_1 = arith.constant 0 : index
    %c0_2 = arith.constant 0 : index
    %1 = vector.load %arg3[%c0_1, %c0_2] : memref<16x256xbf16, #tpu.memory_space<vmem>>, vector<16x256xbf16>
    %c0_3 = arith.constant 0 : index
    %c0_4 = arith.constant 0 : index
    %2 = vector.load %arg4[%c0_3, %c0_4] : memref<64x256xbf16, #tpu.memory_space<vmem>>, vector<64x256xbf16>
    %c0_5 = arith.constant 0 : index
    %c0_6 = arith.constant 0 : index
    %3 = vector.load %arg6[%c0_5, %c0_6] : memref<16x128xbf16, #tpu.memory_space<vmem>>, vector<16x128xbf16>
    %c0_7 = arith.constant 0 : index
    %c0_8 = arith.constant 0 : index
    %4 = vector.load %arg7[%c0_7, %c0_8] : memref<32x128xbf16, #tpu.memory_space<vmem>>, vector<32x128xbf16>
    %c0_9 = arith.constant 0 : index
    %c0_10 = arith.constant 0 : index
    %5 = vector.load %arg9[%c0_9, %c0_10] : memref<32x16xbf16, #tpu.memory_space<vmem>>, vector<32x16xbf16>
    %c0_11 = arith.constant 0 : index
    %c0_12 = arith.constant 0 : index
    %c0_13 = arith.constant 0 : index
    %6 = vector.load %arg0[%c0_11, %c0_12, %c0_13] : memref<2x8x16xf32, #tpu.memory_space<vmem>>, vector<2x8x16xf32>
    %c0_14 = arith.constant 0 : index
    %c0_15 = arith.constant 0 : index
    %c0_16 = arith.constant 0 : index
    %7 = vector.load %arg1[%c0_14, %c0_15, %c0_16] : memref<2x8x16xf32, #tpu.memory_space<vmem>>, vector<2x8x16xf32>
    %c0_17 = arith.constant 0 : index
    %c0_18 = arith.constant 0 : index
    %8 = vector.load %arg5[%c0_17, %c0_18] : memref<1x256xf32, #tpu.memory_space<vmem>>, vector<1x256xf32>
    %9 = vector.shape_cast %8 : vector<1x256xf32> to vector<1x256xf32>
    %10 = vector.broadcast %9 : vector<1x256xf32> to vector<2x256xf32>
    %c0_19 = arith.constant 0 : index
    %c0_20 = arith.constant 0 : index
    %11 = vector.load %arg8[%c0_19, %c0_20] : memref<1x128xf32, #tpu.memory_space<vmem>>, vector<1x128xf32>
    %12 = vector.shape_cast %11 : vector<1x128xf32> to vector<1x128xf32>
    %13 = vector.broadcast %12 : vector<1x128xf32> to vector<2x128xf32>
    %c0_21 = arith.constant 0 : index
    %c0_22 = arith.constant 0 : index
    %14 = vector.load %arg10[%c0_21, %c0_22] : memref<1x16xf32, #tpu.memory_space<vmem>>, vector<1x16xf32>
    %15 = vector.shape_cast %14 : vector<1x16xf32> to vector<1x16xf32>
    %16 = vector.broadcast %15 : vector<1x16xf32> to vector<2x16xf32>
    %17 = vector.extract_strided_slice %6 {offsets = [0, 0, 0], sizes = [2, 1, 16], strides = [1, 1, 1]} : vector<2x8x16xf32> to vector<2x1x16xf32>
    %18 = vector.shape_cast %17 : vector<2x1x16xf32> to vector<2x16xf32>
    %19 = arith.truncf %18 : vector<2x16xf32> to vector<2x16xbf16>
    %cst = arith.constant dense<0.000000e+00> : vector<2x256xf32>
    %20 = tpu.matmul %19, %0, %cst {dimension_numbers = #tpu.dot_dimension_numbers<[1], [0], [0], [1], [0, 0, 1, 1], [], []>} : vector<2x16xbf16>, vector<16x256xbf16>, vector<2x256xf32> -> vector<2x256xf32>
    %21 = vector.extract_strided_slice %7 {offsets = [0, 0, 0], sizes = [2, 1, 16], strides = [1, 1, 1]} : vector<2x8x16xf32> to vector<2x1x16xf32>
    %22 = vector.shape_cast %21 : vector<2x1x16xf32> to vector<2x16xf32>
    %23 = arith.truncf %22 : vector<2x16xf32> to vector<2x16xbf16>
    %cst_23 = arith.constant dense<0.000000e+00> : vector<2x256xf32>
    %24 = tpu.matmul %23, %1, %cst_23 {dimension_numbers = #tpu.dot_dimension_numbers<[1], [0], [0], [1], [0, 0, 1, 1], [], []>} : vector<2x16xbf16>, vector<16x256xbf16>, vector<2x256xf32> -> vector<2x256xf32>
    %25 = arith.addf %20, %24 : vector<2x256xf32>
    %26 = arith.addf %25, %10 : vector<2x256xf32>
    %27 = vector.extract_strided_slice %6 {offsets = [0, 1, 0], sizes = [2, 1, 16], strides = [1, 1, 1]} : vector<2x8x16xf32> to vector<2x1x16xf32>
    %28 = vector.shape_cast %27 : vector<2x1x16xf32> to vector<2x16xf32>
    %29 = arith.truncf %28 : vector<2x16xf32> to vector<2x16xbf16>
    %cst_24 = arith.constant dense<0.000000e+00> : vector<2x256xf32>
    %30 = tpu.matmul %29, %0, %cst_24 {dimension_numbers = #tpu.dot_dimension_numbers<[1], [0], [0], [1], [0, 0, 1, 1], [], []>} : vector<2x16xbf16>, vector<16x256xbf16>, vector<2x256xf32> -> vector<2x256xf32>
    %31 = vector.extract_strided_slice %7 {offsets = [0, 1, 0], sizes = [2, 1, 16], strides = [1, 1, 1]} : vector<2x8x16xf32> to vector<2x1x16xf32>
    %32 = vector.shape_cast %31 : vector<2x1x16xf32> to vector<2x16xf32>
    %33 = arith.truncf %32 : vector<2x16xf32> to vector<2x16xbf16>
    %cst_25 = arith.constant dense<0.000000e+00> : vector<2x256xf32>
    %34 = tpu.matmul %33, %1, %cst_25 {dimension_numbers = #tpu.dot_dimension_numbers<[1], [0], [0], [1], [0, 0, 1, 1], [], []>} : vector<2x16xbf16>, vector<16x256xbf16>, vector<2x256xf32> -> vector<2x256xf32>
    %35 = arith.addf %30, %34 : vector<2x256xf32>
    %36 = arith.addf %35, %10 : vector<2x256xf32>
    %37 = vector.extract_strided_slice %6 {offsets = [0, 2, 0], sizes = [2, 1, 16], strides = [1, 1, 1]} : vector<2x8x16xf32> to vector<2x1x16xf32>
    %38 = vector.shape_cast %37 : vector<2x1x16xf32> to vector<2x16xf32>
    %39 = arith.truncf %38 : vector<2x16xf32> to vector<2x16xbf16>
    %cst_26 = arith.constant dense<0.000000e+00> : vector<2x256xf32>
    %40 = tpu.matmul %39, %0, %cst_26 {dimension_numbers = #tpu.dot_dimension_numbers<[1], [0], [0], [1], [0, 0, 1, 1], [], []>} : vector<2x16xbf16>, vector<16x256xbf16>, vector<2x256xf32> -> vector<2x256xf32>
    %41 = vector.extract_strided_slice %7 {offsets = [0, 2, 0], sizes = [2, 1, 16], strides = [1, 1, 1]} : vector<2x8x16xf32> to vector<2x1x16xf32>
    %42 = vector.shape_cast %41 : vector<2x1x16xf32> to vector<2x16xf32>
    %43 = arith.truncf %42 : vector<2x16xf32> to vector<2x16xbf16>
    %cst_27 = arith.constant dense<0.000000e+00> : vector<2x256xf32>
    %44 = tpu.matmul %43, %1, %cst_27 {dimension_numbers = #tpu.dot_dimension_numbers<[1], [0], [0], [1], [0, 0, 1, 1], [], []>} : vector<2x16xbf16>, vector<16x256xbf16>, vector<2x256xf32> -> vector<2x256xf32>
    %45 = arith.addf %40, %44 : vector<2x256xf32>
    %46 = arith.addf %45, %10 : vector<2x256xf32>
    %47 = vector.extract_strided_slice %6 {offsets = [0, 3, 0], sizes = [2, 1, 16], strides = [1, 1, 1]} : vector<2x8x16xf32> to vector<2x1x16xf32>
    %48 = vector.shape_cast %47 : vector<2x1x16xf32> to vector<2x16xf32>
    %49 = arith.truncf %48 : vector<2x16xf32> to vector<2x16xbf16>
    %cst_28 = arith.constant dense<0.000000e+00> : vector<2x256xf32>
    %50 = tpu.matmul %49, %0, %cst_28 {dimension_numbers = #tpu.dot_dimension_numbers<[1], [0], [0], [1], [0, 0, 1, 1], [], []>} : vector<2x16xbf16>, vector<16x256xbf16>, vector<2x256xf32> -> vector<2x256xf32>
    %51 = vector.extract_strided_slice %7 {offsets = [0, 3, 0], sizes = [2, 1, 16], strides = [1, 1, 1]} : vector<2x8x16xf32> to vector<2x1x16xf32>
    %52 = vector.shape_cast %51 : vector<2x1x16xf32> to vector<2x16xf32>
    %53 = arith.truncf %52 : vector<2x16xf32> to vector<2x16xbf16>
    %cst_29 = arith.constant dense<0.000000e+00> : vector<2x256xf32>
    %54 = tpu.matmul %53, %1, %cst_29 {dimension_numbers = #tpu.dot_dimension_numbers<[1], [0], [0], [1], [0, 0, 1, 1], [], []>} : vector<2x16xbf16>, vector<16x256xbf16>, vector<2x256xf32> -> vector<2x256xf32>
    %55 = arith.addf %50, %54 : vector<2x256xf32>
    %56 = arith.addf %55, %10 : vector<2x256xf32>
    %57 = vector.extract_strided_slice %6 {offsets = [0, 4, 0], sizes = [2, 1, 16], strides = [1, 1, 1]} : vector<2x8x16xf32> to vector<2x1x16xf32>
    %58 = vector.shape_cast %57 : vector<2x1x16xf32> to vector<2x16xf32>
    %59 = arith.truncf %58 : vector<2x16xf32> to vector<2x16xbf16>
    %cst_30 = arith.constant dense<0.000000e+00> : vector<2x256xf32>
    %60 = tpu.matmul %59, %0, %cst_30 {dimension_numbers = #tpu.dot_dimension_numbers<[1], [0], [0], [1], [0, 0, 1, 1], [], []>} : vector<2x16xbf16>, vector<16x256xbf16>, vector<2x256xf32> -> vector<2x256xf32>
    %61 = vector.extract_strided_slice %7 {offsets = [0, 4, 0], sizes = [2, 1, 16], strides = [1, 1, 1]} : vector<2x8x16xf32> to vector<2x1x16xf32>
    %62 = vector.shape_cast %61 : vector<2x1x16xf32> to vector<2x16xf32>
    %63 = arith.truncf %62 : vector<2x16xf32> to vector<2x16xbf16>
    %cst_31 = arith.constant dense<0.000000e+00> : vector<2x256xf32>
    %64 = tpu.matmul %63, %1, %cst_31 {dimension_numbers = #tpu.dot_dimension_numbers<[1], [0], [0], [1], [0, 0, 1, 1], [], []>} : vector<2x16xbf16>, vector<16x256xbf16>, vector<2x256xf32> -> vector<2x256xf32>
    %65 = arith.addf %60, %64 : vector<2x256xf32>
    %66 = arith.addf %65, %10 : vector<2x256xf32>
    %67 = vector.extract_strided_slice %6 {offsets = [0, 5, 0], sizes = [2, 1, 16], strides = [1, 1, 1]} : vector<2x8x16xf32> to vector<2x1x16xf32>
    %68 = vector.shape_cast %67 : vector<2x1x16xf32> to vector<2x16xf32>
    %69 = arith.truncf %68 : vector<2x16xf32> to vector<2x16xbf16>
    %cst_32 = arith.constant dense<0.000000e+00> : vector<2x256xf32>
    %70 = tpu.matmul %69, %0, %cst_32 {dimension_numbers = #tpu.dot_dimension_numbers<[1], [0], [0], [1], [0, 0, 1, 1], [], []>} : vector<2x16xbf16>, vector<16x256xbf16>, vector<2x256xf32> -> vector<2x256xf32>
    %71 = vector.extract_strided_slice %7 {offsets = [0, 5, 0], sizes = [2, 1, 16], strides = [1, 1, 1]} : vector<2x8x16xf32> to vector<2x1x16xf32>
    %72 = vector.shape_cast %71 : vector<2x1x16xf32> to vector<2x16xf32>
    %73 = arith.truncf %72 : vector<2x16xf32> to vector<2x16xbf16>
    %cst_33 = arith.constant dense<0.000000e+00> : vector<2x256xf32>
    %74 = tpu.matmul %73, %1, %cst_33 {dimension_numbers = #tpu.dot_dimension_numbers<[1], [0], [0], [1], [0, 0, 1, 1], [], []>} : vector<2x16xbf16>, vector<16x256xbf16>, vector<2x256xf32> -> vector<2x256xf32>
    %75 = arith.addf %70, %74 : vector<2x256xf32>
    %76 = arith.addf %75, %10 : vector<2x256xf32>
    %77 = vector.extract_strided_slice %6 {offsets = [0, 6, 0], sizes = [2, 1, 16], strides = [1, 1, 1]} : vector<2x8x16xf32> to vector<2x1x16xf32>
    %78 = vector.shape_cast %77 : vector<2x1x16xf32> to vector<2x16xf32>
    %79 = arith.truncf %78 : vector<2x16xf32> to vector<2x16xbf16>
    %cst_34 = arith.constant dense<0.000000e+00> : vector<2x256xf32>
    %80 = tpu.matmul %79, %0, %cst_34 {dimension_numbers = #tpu.dot_dimension_numbers<[1], [0], [0], [1], [0, 0, 1, 1], [], []>} : vector<2x16xbf16>, vector<16x256xbf16>, vector<2x256xf32> -> vector<2x256xf32>
    %81 = vector.extract_strided_slice %7 {offsets = [0, 6, 0], sizes = [2, 1, 16], strides = [1, 1, 1]} : vector<2x8x16xf32> to vector<2x1x16xf32>
    %82 = vector.shape_cast %81 : vector<2x1x16xf32> to vector<2x16xf32>
    %83 = arith.truncf %82 : vector<2x16xf32> to vector<2x16xbf16>
    %cst_35 = arith.constant dense<0.000000e+00> : vector<2x256xf32>
    %84 = tpu.matmul %83, %1, %cst_35 {dimension_numbers = #tpu.dot_dimension_numbers<[1], [0], [0], [1], [0, 0, 1, 1], [], []>} : vector<2x16xbf16>, vector<16x256xbf16>, vector<2x256xf32> -> vector<2x256xf32>
    %85 = arith.addf %80, %84 : vector<2x256xf32>
    %86 = arith.addf %85, %10 : vector<2x256xf32>
    %87 = vector.extract_strided_slice %6 {offsets = [0, 7, 0], sizes = [2, 1, 16], strides = [1, 1, 1]} : vector<2x8x16xf32> to vector<2x1x16xf32>
    %88 = vector.shape_cast %87 : vector<2x1x16xf32> to vector<2x16xf32>
    %89 = arith.truncf %88 : vector<2x16xf32> to vector<2x16xbf16>
    %cst_36 = arith.constant dense<0.000000e+00> : vector<2x256xf32>
    %90 = tpu.matmul %89, %0, %cst_36 {dimension_numbers = #tpu.dot_dimension_numbers<[1], [0], [0], [1], [0, 0, 1, 1], [], []>} : vector<2x16xbf16>, vector<16x256xbf16>, vector<2x256xf32> -> vector<2x256xf32>
    %91 = vector.extract_strided_slice %7 {offsets = [0, 7, 0], sizes = [2, 1, 16], strides = [1, 1, 1]} : vector<2x8x16xf32> to vector<2x1x16xf32>
    %92 = vector.shape_cast %91 : vector<2x1x16xf32> to vector<2x16xf32>
    %93 = arith.truncf %92 : vector<2x16xf32> to vector<2x16xbf16>
    %cst_37 = arith.constant dense<0.000000e+00> : vector<2x256xf32>
    %94 = tpu.matmul %93, %1, %cst_37 {dimension_numbers = #tpu.dot_dimension_numbers<[1], [0], [0], [1], [0, 0, 1, 1], [], []>} : vector<2x16xbf16>, vector<16x256xbf16>, vector<2x256xf32> -> vector<2x256xf32>
    %95 = arith.addf %90, %94 : vector<2x256xf32>
    %96 = arith.addf %95, %10 : vector<2x256xf32>
    %cst_38 = arith.constant 0.000000e+00 : f32
    %97 = vector.broadcast %cst_38 : f32 to vector<2x64xf32>
    %98 = vector.extract_strided_slice %26 {offsets = [0, 0], sizes = [2, 192], strides = [1, 1]} : vector<2x256xf32> to vector<2x192xf32>
    %99 = arith.negf %98 : vector<2x192xf32>
    %100 = math.exp %99 : vector<2x192xf32>
    %cst_39 = arith.constant 1.000000e+00 : f32
    %101 = vector.broadcast %cst_39 : f32 to vector<2x192xf32>
    %102 = arith.addf %101, %100 : vector<2x192xf32>
    %103 = arith.divf %101, %102 : vector<2x192xf32>
    %104 = vector.extract_strided_slice %103 {offsets = [0, 0], sizes = [2, 64], strides = [1, 1]} : vector<2x192xf32> to vector<2x64xf32>
    %105 = vector.extract_strided_slice %103 {offsets = [0, 64], sizes = [2, 64], strides = [1, 1]} : vector<2x192xf32> to vector<2x64xf32>
    %106 = vector.extract_strided_slice %103 {offsets = [0, 128], sizes = [2, 64], strides = [1, 1]} : vector<2x192xf32> to vector<2x64xf32>
    %107 = vector.extract_strided_slice %26 {offsets = [0, 192], sizes = [2, 64], strides = [1, 1]} : vector<2x256xf32> to vector<2x64xf32>
    %108 = math.tanh %107 : vector<2x64xf32>
    %109 = arith.mulf %105, %97 : vector<2x64xf32>
    %110 = arith.mulf %104, %108 : vector<2x64xf32>
    %111 = arith.addf %109, %110 : vector<2x64xf32>
    %112 = math.tanh %111 : vector<2x64xf32>
    %113 = arith.mulf %106, %112 : vector<2x64xf32>
    %114 = arith.truncf %113 : vector<2x64xf32> to vector<2x64xbf16>
    %cst_40 = arith.constant dense<0.000000e+00> : vector<2x256xf32>
    %115 = tpu.matmul %114, %2, %cst_40 {dimension_numbers = #tpu.dot_dimension_numbers<[1], [0], [0], [1], [0, 0, 1, 1], [], []>} : vector<2x64xbf16>, vector<64x256xbf16>, vector<2x256xf32> -> vector<2x256xf32>
    %116 = arith.addf %115, %36 : vector<2x256xf32>
    %117 = vector.extract_strided_slice %116 {offsets = [0, 0], sizes = [2, 192], strides = [1, 1]} : vector<2x256xf32> to vector<2x192xf32>
    %118 = arith.negf %117 : vector<2x192xf32>
    %119 = math.exp %118 : vector<2x192xf32>
    %cst_41 = arith.constant 1.000000e+00 : f32
    %120 = vector.broadcast %cst_41 : f32 to vector<2x192xf32>
    %121 = arith.addf %120, %119 : vector<2x192xf32>
    %122 = arith.divf %120, %121 : vector<2x192xf32>
    %123 = vector.extract_strided_slice %122 {offsets = [0, 0], sizes = [2, 64], strides = [1, 1]} : vector<2x192xf32> to vector<2x64xf32>
    %124 = vector.extract_strided_slice %122 {offsets = [0, 64], sizes = [2, 64], strides = [1, 1]} : vector<2x192xf32> to vector<2x64xf32>
    %125 = vector.extract_strided_slice %122 {offsets = [0, 128], sizes = [2, 64], strides = [1, 1]} : vector<2x192xf32> to vector<2x64xf32>
    %126 = vector.extract_strided_slice %116 {offsets = [0, 192], sizes = [2, 64], strides = [1, 1]} : vector<2x256xf32> to vector<2x64xf32>
    %127 = math.tanh %126 : vector<2x64xf32>
    %128 = arith.mulf %124, %111 : vector<2x64xf32>
    %129 = arith.mulf %123, %127 : vector<2x64xf32>
    %130 = arith.addf %128, %129 : vector<2x64xf32>
    %131 = math.tanh %130 : vector<2x64xf32>
    %132 = arith.mulf %125, %131 : vector<2x64xf32>
    %133 = arith.truncf %132 : vector<2x64xf32> to vector<2x64xbf16>
    %cst_42 = arith.constant dense<0.000000e+00> : vector<2x256xf32>
    %134 = tpu.matmul %133, %2, %cst_42 {dimension_numbers = #tpu.dot_dimension_numbers<[1], [0], [0], [1], [0, 0, 1, 1], [], []>} : vector<2x64xbf16>, vector<64x256xbf16>, vector<2x256xf32> -> vector<2x256xf32>
    %135 = arith.addf %134, %46 : vector<2x256xf32>
    %136 = vector.extract_strided_slice %135 {offsets = [0, 0], sizes = [2, 192], strides = [1, 1]} : vector<2x256xf32> to vector<2x192xf32>
    %137 = arith.negf %136 : vector<2x192xf32>
    %138 = math.exp %137 : vector<2x192xf32>
    %cst_43 = arith.constant 1.000000e+00 : f32
    %139 = vector.broadcast %cst_43 : f32 to vector<2x192xf32>
    %140 = arith.addf %139, %138 : vector<2x192xf32>
    %141 = arith.divf %139, %140 : vector<2x192xf32>
    %142 = vector.extract_strided_slice %141 {offsets = [0, 0], sizes = [2, 64], strides = [1, 1]} : vector<2x192xf32> to vector<2x64xf32>
    %143 = vector.extract_strided_slice %141 {offsets = [0, 64], sizes = [2, 64], strides = [1, 1]} : vector<2x192xf32> to vector<2x64xf32>
    %144 = vector.extract_strided_slice %141 {offsets = [0, 128], sizes = [2, 64], strides = [1, 1]} : vector<2x192xf32> to vector<2x64xf32>
    %145 = vector.extract_strided_slice %135 {offsets = [0, 192], sizes = [2, 64], strides = [1, 1]} : vector<2x256xf32> to vector<2x64xf32>
    %146 = math.tanh %145 : vector<2x64xf32>
    %147 = arith.mulf %143, %130 : vector<2x64xf32>
    %148 = arith.mulf %142, %146 : vector<2x64xf32>
    %149 = arith.addf %147, %148 : vector<2x64xf32>
    %150 = math.tanh %149 : vector<2x64xf32>
    %151 = arith.mulf %144, %150 : vector<2x64xf32>
    %152 = arith.truncf %151 : vector<2x64xf32> to vector<2x64xbf16>
    %cst_44 = arith.constant dense<0.000000e+00> : vector<2x256xf32>
    %153 = tpu.matmul %152, %2, %cst_44 {dimension_numbers = #tpu.dot_dimension_numbers<[1], [0], [0], [1], [0, 0, 1, 1], [], []>} : vector<2x64xbf16>, vector<64x256xbf16>, vector<2x256xf32> -> vector<2x256xf32>
    %154 = arith.addf %153, %56 : vector<2x256xf32>
    %155 = vector.extract_strided_slice %154 {offsets = [0, 0], sizes = [2, 192], strides = [1, 1]} : vector<2x256xf32> to vector<2x192xf32>
    %156 = arith.negf %155 : vector<2x192xf32>
    %157 = math.exp %156 : vector<2x192xf32>
    %cst_45 = arith.constant 1.000000e+00 : f32
    %158 = vector.broadcast %cst_45 : f32 to vector<2x192xf32>
    %159 = arith.addf %158, %157 : vector<2x192xf32>
    %160 = arith.divf %158, %159 : vector<2x192xf32>
    %161 = vector.extract_strided_slice %160 {offsets = [0, 0], sizes = [2, 64], strides = [1, 1]} : vector<2x192xf32> to vector<2x64xf32>
    %162 = vector.extract_strided_slice %160 {offsets = [0, 64], sizes = [2, 64], strides = [1, 1]} : vector<2x192xf32> to vector<2x64xf32>
    %163 = vector.extract_strided_slice %160 {offsets = [0, 128], sizes = [2, 64], strides = [1, 1]} : vector<2x192xf32> to vector<2x64xf32>
    %164 = vector.extract_strided_slice %154 {offsets = [0, 192], sizes = [2, 64], strides = [1, 1]} : vector<2x256xf32> to vector<2x64xf32>
    %165 = math.tanh %164 : vector<2x64xf32>
    %166 = arith.mulf %162, %149 : vector<2x64xf32>
    %167 = arith.mulf %161, %165 : vector<2x64xf32>
    %168 = arith.addf %166, %167 : vector<2x64xf32>
    %169 = math.tanh %168 : vector<2x64xf32>
    %170 = arith.mulf %163, %169 : vector<2x64xf32>
    %171 = arith.truncf %170 : vector<2x64xf32> to vector<2x64xbf16>
    %cst_46 = arith.constant dense<0.000000e+00> : vector<2x256xf32>
    %172 = tpu.matmul %171, %2, %cst_46 {dimension_numbers = #tpu.dot_dimension_numbers<[1], [0], [0], [1], [0, 0, 1, 1], [], []>} : vector<2x64xbf16>, vector<64x256xbf16>, vector<2x256xf32> -> vector<2x256xf32>
    %173 = arith.addf %172, %66 : vector<2x256xf32>
    %174 = vector.extract_strided_slice %173 {offsets = [0, 0], sizes = [2, 192], strides = [1, 1]} : vector<2x256xf32> to vector<2x192xf32>
    %175 = arith.negf %174 : vector<2x192xf32>
    %176 = math.exp %175 : vector<2x192xf32>
    %cst_47 = arith.constant 1.000000e+00 : f32
    %177 = vector.broadcast %cst_47 : f32 to vector<2x192xf32>
    %178 = arith.addf %177, %176 : vector<2x192xf32>
    %179 = arith.divf %177, %178 : vector<2x192xf32>
    %180 = vector.extract_strided_slice %179 {offsets = [0, 0], sizes = [2, 64], strides = [1, 1]} : vector<2x192xf32> to vector<2x64xf32>
    %181 = vector.extract_strided_slice %179 {offsets = [0, 64], sizes = [2, 64], strides = [1, 1]} : vector<2x192xf32> to vector<2x64xf32>
    %182 = vector.extract_strided_slice %179 {offsets = [0, 128], sizes = [2, 64], strides = [1, 1]} : vector<2x192xf32> to vector<2x64xf32>
    %183 = vector.extract_strided_slice %173 {offsets = [0, 192], sizes = [2, 64], strides = [1, 1]} : vector<2x256xf32> to vector<2x64xf32>
    %184 = math.tanh %183 : vector<2x64xf32>
    %185 = arith.mulf %181, %168 : vector<2x64xf32>
    %186 = arith.mulf %180, %184 : vector<2x64xf32>
    %187 = arith.addf %185, %186 : vector<2x64xf32>
    %188 = math.tanh %187 : vector<2x64xf32>
    %189 = arith.mulf %182, %188 : vector<2x64xf32>
    %190 = arith.truncf %189 : vector<2x64xf32> to vector<2x64xbf16>
    %cst_48 = arith.constant dense<0.000000e+00> : vector<2x256xf32>
    %191 = tpu.matmul %190, %2, %cst_48 {dimension_numbers = #tpu.dot_dimension_numbers<[1], [0], [0], [1], [0, 0, 1, 1], [], []>} : vector<2x64xbf16>, vector<64x256xbf16>, vector<2x256xf32> -> vector<2x256xf32>
    %192 = arith.addf %191, %76 : vector<2x256xf32>
    %193 = vector.extract_strided_slice %192 {offsets = [0, 0], sizes = [2, 192], strides = [1, 1]} : vector<2x256xf32> to vector<2x192xf32>
    %194 = arith.negf %193 : vector<2x192xf32>
    %195 = math.exp %194 : vector<2x192xf32>
    %cst_49 = arith.constant 1.000000e+00 : f32
    %196 = vector.broadcast %cst_49 : f32 to vector<2x192xf32>
    %197 = arith.addf %196, %195 : vector<2x192xf32>
    %198 = arith.divf %196, %197 : vector<2x192xf32>
    %199 = vector.extract_strided_slice %198 {offsets = [0, 0], sizes = [2, 64], strides = [1, 1]} : vector<2x192xf32> to vector<2x64xf32>
    %200 = vector.extract_strided_slice %198 {offsets = [0, 64], sizes = [2, 64], strides = [1, 1]} : vector<2x192xf32> to vector<2x64xf32>
    %201 = vector.extract_strided_slice %198 {offsets = [0, 128], sizes = [2, 64], strides = [1, 1]} : vector<2x192xf32> to vector<2x64xf32>
    %202 = vector.extract_strided_slice %192 {offsets = [0, 192], sizes = [2, 64], strides = [1, 1]} : vector<2x256xf32> to vector<2x64xf32>
    %203 = math.tanh %202 : vector<2x64xf32>
    %204 = arith.mulf %200, %187 : vector<2x64xf32>
    %205 = arith.mulf %199, %203 : vector<2x64xf32>
    %206 = arith.addf %204, %205 : vector<2x64xf32>
    %207 = math.tanh %206 : vector<2x64xf32>
    %208 = arith.mulf %201, %207 : vector<2x64xf32>
    %209 = arith.truncf %208 : vector<2x64xf32> to vector<2x64xbf16>
    %cst_50 = arith.constant dense<0.000000e+00> : vector<2x256xf32>
    %210 = tpu.matmul %209, %2, %cst_50 {dimension_numbers = #tpu.dot_dimension_numbers<[1], [0], [0], [1], [0, 0, 1, 1], [], []>} : vector<2x64xbf16>, vector<64x256xbf16>, vector<2x256xf32> -> vector<2x256xf32>
    %211 = arith.addf %210, %86 : vector<2x256xf32>
    %212 = vector.extract_strided_slice %211 {offsets = [0, 0], sizes = [2, 192], strides = [1, 1]} : vector<2x256xf32> to vector<2x192xf32>
    %213 = arith.negf %212 : vector<2x192xf32>
    %214 = math.exp %213 : vector<2x192xf32>
    %cst_51 = arith.constant 1.000000e+00 : f32
    %215 = vector.broadcast %cst_51 : f32 to vector<2x192xf32>
    %216 = arith.addf %215, %214 : vector<2x192xf32>
    %217 = arith.divf %215, %216 : vector<2x192xf32>
    %218 = vector.extract_strided_slice %217 {offsets = [0, 0], sizes = [2, 64], strides = [1, 1]} : vector<2x192xf32> to vector<2x64xf32>
    %219 = vector.extract_strided_slice %217 {offsets = [0, 64], sizes = [2, 64], strides = [1, 1]} : vector<2x192xf32> to vector<2x64xf32>
    %220 = vector.extract_strided_slice %217 {offsets = [0, 128], sizes = [2, 64], strides = [1, 1]} : vector<2x192xf32> to vector<2x64xf32>
    %221 = vector.extract_strided_slice %211 {offsets = [0, 192], sizes = [2, 64], strides = [1, 1]} : vector<2x256xf32> to vector<2x64xf32>
    %222 = math.tanh %221 : vector<2x64xf32>
    %223 = arith.mulf %219, %206 : vector<2x64xf32>
    %224 = arith.mulf %218, %222 : vector<2x64xf32>
    %225 = arith.addf %223, %224 : vector<2x64xf32>
    %226 = math.tanh %225 : vector<2x64xf32>
    %227 = arith.mulf %220, %226 : vector<2x64xf32>
    %228 = arith.truncf %227 : vector<2x64xf32> to vector<2x64xbf16>
    %cst_52 = arith.constant dense<0.000000e+00> : vector<2x256xf32>
    %229 = tpu.matmul %228, %2, %cst_52 {dimension_numbers = #tpu.dot_dimension_numbers<[1], [0], [0], [1], [0, 0, 1, 1], [], []>} : vector<2x64xbf16>, vector<64x256xbf16>, vector<2x256xf32> -> vector<2x256xf32>
    %230 = arith.addf %229, %96 : vector<2x256xf32>
    %231 = vector.extract_strided_slice %230 {offsets = [0, 0], sizes = [2, 192], strides = [1, 1]} : vector<2x256xf32> to vector<2x192xf32>
    %232 = arith.negf %231 : vector<2x192xf32>
    %233 = math.exp %232 : vector<2x192xf32>
    %cst_53 = arith.constant 1.000000e+00 : f32
    %234 = vector.broadcast %cst_53 : f32 to vector<2x192xf32>
    %235 = arith.addf %234, %233 : vector<2x192xf32>
    %236 = arith.divf %234, %235 : vector<2x192xf32>
    %237 = vector.extract_strided_slice %236 {offsets = [0, 0], sizes = [2, 64], strides = [1, 1]} : vector<2x192xf32> to vector<2x64xf32>
    %238 = vector.extract_strided_slice %236 {offsets = [0, 64], sizes = [2, 64], strides = [1, 1]} : vector<2x192xf32> to vector<2x64xf32>
    %239 = vector.extract_strided_slice %236 {offsets = [0, 128], sizes = [2, 64], strides = [1, 1]} : vector<2x192xf32> to vector<2x64xf32>
    %240 = vector.extract_strided_slice %230 {offsets = [0, 192], sizes = [2, 64], strides = [1, 1]} : vector<2x256xf32> to vector<2x64xf32>
    %241 = math.tanh %240 : vector<2x64xf32>
    %242 = arith.mulf %238, %225 : vector<2x64xf32>
    %243 = arith.mulf %237, %241 : vector<2x64xf32>
    %244 = arith.addf %242, %243 : vector<2x64xf32>
    %245 = math.tanh %244 : vector<2x64xf32>
    %246 = arith.mulf %239, %245 : vector<2x64xf32>
    %247 = vector.extract_strided_slice %246 {offsets = [0, 0], sizes = [2, 32], strides = [1, 1]} : vector<2x64xf32> to vector<2x32xf32>
    %248 = vector.extract_strided_slice %246 {offsets = [0, 32], sizes = [2, 32], strides = [1, 1]} : vector<2x64xf32> to vector<2x32xf32>
    %249 = arith.addf %247, %248 : vector<2x32xf32>
    %250 = vector.extract_strided_slice %244 {offsets = [0, 0], sizes = [2, 32], strides = [1, 1]} : vector<2x64xf32> to vector<2x32xf32>
    %251 = vector.extract_strided_slice %244 {offsets = [0, 32], sizes = [2, 32], strides = [1, 1]} : vector<2x64xf32> to vector<2x32xf32>
    %252 = arith.addf %250, %251 : vector<2x32xf32>
    %253 = vector.extract_strided_slice %7 {offsets = [0, 7, 0], sizes = [2, 1, 16], strides = [1, 1, 1]} : vector<2x8x16xf32> to vector<2x1x16xf32>
    %254 = vector.shape_cast %253 : vector<2x1x16xf32> to vector<2x16xf32>
    %255 = arith.truncf %254 : vector<2x16xf32> to vector<2x16xbf16>
    %cst_54 = arith.constant dense<0.000000e+00> : vector<2x128xf32>
    %256 = tpu.matmul %255, %3, %cst_54 {dimension_numbers = #tpu.dot_dimension_numbers<[1], [0], [0], [1], [0, 0, 1, 1], [], []>} : vector<2x16xbf16>, vector<16x128xbf16>, vector<2x128xf32> -> vector<2x128xf32>
    %257 = arith.truncf %249 : vector<2x32xf32> to vector<2x32xbf16>
    %cst_55 = arith.constant dense<0.000000e+00> : vector<2x128xf32>
    %258 = tpu.matmul %257, %4, %cst_55 {dimension_numbers = #tpu.dot_dimension_numbers<[1], [0], [0], [1], [0, 0, 1, 1], [], []>} : vector<2x32xbf16>, vector<32x128xbf16>, vector<2x128xf32> -> vector<2x128xf32>
    %259 = arith.addf %256, %258 : vector<2x128xf32>
    %260 = arith.addf %259, %13 : vector<2x128xf32>
    %261 = vector.extract_strided_slice %260 {offsets = [0, 0], sizes = [2, 96], strides = [1, 1]} : vector<2x128xf32> to vector<2x96xf32>
    %262 = arith.negf %261 : vector<2x96xf32>
    %263 = math.exp %262 : vector<2x96xf32>
    %cst_56 = arith.constant 1.000000e+00 : f32
    %264 = vector.broadcast %cst_56 : f32 to vector<2x96xf32>
    %265 = arith.addf %264, %263 : vector<2x96xf32>
    %266 = arith.divf %264, %265 : vector<2x96xf32>
    %267 = vector.extract_strided_slice %266 {offsets = [0, 0], sizes = [2, 32], strides = [1, 1]} : vector<2x96xf32> to vector<2x32xf32>
    %268 = vector.extract_strided_slice %266 {offsets = [0, 32], sizes = [2, 32], strides = [1, 1]} : vector<2x96xf32> to vector<2x32xf32>
    %269 = vector.extract_strided_slice %266 {offsets = [0, 64], sizes = [2, 32], strides = [1, 1]} : vector<2x96xf32> to vector<2x32xf32>
    %270 = vector.extract_strided_slice %260 {offsets = [0, 96], sizes = [2, 32], strides = [1, 1]} : vector<2x128xf32> to vector<2x32xf32>
    %271 = math.tanh %270 : vector<2x32xf32>
    %272 = arith.mulf %268, %252 : vector<2x32xf32>
    %273 = arith.mulf %267, %271 : vector<2x32xf32>
    %274 = arith.addf %272, %273 : vector<2x32xf32>
    %275 = math.tanh %274 : vector<2x32xf32>
    %276 = arith.mulf %269, %275 : vector<2x32xf32>
    %277 = arith.truncf %276 : vector<2x32xf32> to vector<2x32xbf16>
    %cst_57 = arith.constant dense<0.000000e+00> : vector<2x16xf32>
    %278 = tpu.matmul %277, %5, %cst_57 {dimension_numbers = #tpu.dot_dimension_numbers<[1], [0], [0], [1], [0, 0, 1, 1], [], []>} : vector<2x32xbf16>, vector<32x16xbf16>, vector<2x16xf32> -> vector<2x16xf32>
    %279 = arith.addf %278, %16 : vector<2x16xf32>
    %cst_58 = arith.constant -1.000000e+00 : f32
    %cst_59 = arith.constant 1.000000e+00 : f32
    %280 = vector.broadcast %cst_58 : f32 to vector<2x16xf32>
    %281 = arith.maximumf %280, %279 : vector<2x16xf32>
    %282 = vector.broadcast %cst_59 : f32 to vector<2x16xf32>
    %283 = arith.minimumf %282, %281 : vector<2x16xf32>
    %284 = arith.truncf %283 : vector<2x16xf32> to vector<2x16xbf16>
    %cst_60 = arith.constant dense<0.000000e+00> : vector<2x128xf32>
    %285 = tpu.matmul %284, %3, %cst_60 {dimension_numbers = #tpu.dot_dimension_numbers<[1], [0], [0], [1], [0, 0, 1, 1], [], []>} : vector<2x16xbf16>, vector<16x128xbf16>, vector<2x128xf32> -> vector<2x128xf32>
    %286 = arith.truncf %276 : vector<2x32xf32> to vector<2x32xbf16>
    %cst_61 = arith.constant dense<0.000000e+00> : vector<2x128xf32>
    %287 = tpu.matmul %286, %4, %cst_61 {dimension_numbers = #tpu.dot_dimension_numbers<[1], [0], [0], [1], [0, 0, 1, 1], [], []>} : vector<2x32xbf16>, vector<32x128xbf16>, vector<2x128xf32> -> vector<2x128xf32>
    %288 = arith.addf %285, %287 : vector<2x128xf32>
    %289 = arith.addf %288, %13 : vector<2x128xf32>
    %290 = vector.extract_strided_slice %289 {offsets = [0, 0], sizes = [2, 96], strides = [1, 1]} : vector<2x128xf32> to vector<2x96xf32>
    %291 = arith.negf %290 : vector<2x96xf32>
    %292 = math.exp %291 : vector<2x96xf32>
    %cst_62 = arith.constant 1.000000e+00 : f32
    %293 = vector.broadcast %cst_62 : f32 to vector<2x96xf32>
    %294 = arith.addf %293, %292 : vector<2x96xf32>
    %295 = arith.divf %293, %294 : vector<2x96xf32>
    %296 = vector.extract_strided_slice %295 {offsets = [0, 0], sizes = [2, 32], strides = [1, 1]} : vector<2x96xf32> to vector<2x32xf32>
    %297 = vector.extract_strided_slice %295 {offsets = [0, 32], sizes = [2, 32], strides = [1, 1]} : vector<2x96xf32> to vector<2x32xf32>
    %298 = vector.extract_strided_slice %295 {offsets = [0, 64], sizes = [2, 32], strides = [1, 1]} : vector<2x96xf32> to vector<2x32xf32>
    %299 = vector.extract_strided_slice %289 {offsets = [0, 96], sizes = [2, 32], strides = [1, 1]} : vector<2x128xf32> to vector<2x32xf32>
    %300 = math.tanh %299 : vector<2x32xf32>
    %301 = arith.mulf %297, %274 : vector<2x32xf32>
    %302 = arith.mulf %296, %300 : vector<2x32xf32>
    %303 = arith.addf %301, %302 : vector<2x32xf32>
    %304 = math.tanh %303 : vector<2x32xf32>
    %305 = arith.mulf %298, %304 : vector<2x32xf32>
    %306 = arith.truncf %305 : vector<2x32xf32> to vector<2x32xbf16>
    %cst_63 = arith.constant dense<0.000000e+00> : vector<2x16xf32>
    %307 = tpu.matmul %306, %5, %cst_63 {dimension_numbers = #tpu.dot_dimension_numbers<[1], [0], [0], [1], [0, 0, 1, 1], [], []>} : vector<2x32xbf16>, vector<32x16xbf16>, vector<2x16xf32> -> vector<2x16xf32>
    %308 = arith.addf %307, %16 : vector<2x16xf32>
    %cst_64 = arith.constant -1.000000e+00 : f32
    %cst_65 = arith.constant 1.000000e+00 : f32
    %309 = vector.broadcast %cst_64 : f32 to vector<2x16xf32>
    %310 = arith.maximumf %309, %308 : vector<2x16xf32>
    %311 = vector.broadcast %cst_65 : f32 to vector<2x16xf32>
    %312 = arith.minimumf %311, %310 : vector<2x16xf32>
    %313 = arith.truncf %312 : vector<2x16xf32> to vector<2x16xbf16>
    %cst_66 = arith.constant dense<0.000000e+00> : vector<2x128xf32>
    %314 = tpu.matmul %313, %3, %cst_66 {dimension_numbers = #tpu.dot_dimension_numbers<[1], [0], [0], [1], [0, 0, 1, 1], [], []>} : vector<2x16xbf16>, vector<16x128xbf16>, vector<2x128xf32> -> vector<2x128xf32>
    %315 = arith.truncf %305 : vector<2x32xf32> to vector<2x32xbf16>
    %cst_67 = arith.constant dense<0.000000e+00> : vector<2x128xf32>
    %316 = tpu.matmul %315, %4, %cst_67 {dimension_numbers = #tpu.dot_dimension_numbers<[1], [0], [0], [1], [0, 0, 1, 1], [], []>} : vector<2x32xbf16>, vector<32x128xbf16>, vector<2x128xf32> -> vector<2x128xf32>
    %317 = arith.addf %314, %316 : vector<2x128xf32>
    %318 = arith.addf %317, %13 : vector<2x128xf32>
    %319 = vector.extract_strided_slice %318 {offsets = [0, 0], sizes = [2, 96], strides = [1, 1]} : vector<2x128xf32> to vector<2x96xf32>
    %320 = arith.negf %319 : vector<2x96xf32>
    %321 = math.exp %320 : vector<2x96xf32>
    %cst_68 = arith.constant 1.000000e+00 : f32
    %322 = vector.broadcast %cst_68 : f32 to vector<2x96xf32>
    %323 = arith.addf %322, %321 : vector<2x96xf32>
    %324 = arith.divf %322, %323 : vector<2x96xf32>
    %325 = vector.extract_strided_slice %324 {offsets = [0, 0], sizes = [2, 32], strides = [1, 1]} : vector<2x96xf32> to vector<2x32xf32>
    %326 = vector.extract_strided_slice %324 {offsets = [0, 32], sizes = [2, 32], strides = [1, 1]} : vector<2x96xf32> to vector<2x32xf32>
    %327 = vector.extract_strided_slice %324 {offsets = [0, 64], sizes = [2, 32], strides = [1, 1]} : vector<2x96xf32> to vector<2x32xf32>
    %328 = vector.extract_strided_slice %318 {offsets = [0, 96], sizes = [2, 32], strides = [1, 1]} : vector<2x128xf32> to vector<2x32xf32>
    %329 = math.tanh %328 : vector<2x32xf32>
    %330 = arith.mulf %326, %303 : vector<2x32xf32>
    %331 = arith.mulf %325, %329 : vector<2x32xf32>
    %332 = arith.addf %330, %331 : vector<2x32xf32>
    %333 = math.tanh %332 : vector<2x32xf32>
    %334 = arith.mulf %327, %333 : vector<2x32xf32>
    %335 = arith.truncf %334 : vector<2x32xf32> to vector<2x32xbf16>
    %cst_69 = arith.constant dense<0.000000e+00> : vector<2x16xf32>
    %336 = tpu.matmul %335, %5, %cst_69 {dimension_numbers = #tpu.dot_dimension_numbers<[1], [0], [0], [1], [0, 0, 1, 1], [], []>} : vector<2x32xbf16>, vector<32x16xbf16>, vector<2x16xf32> -> vector<2x16xf32>
    %337 = arith.addf %336, %16 : vector<2x16xf32>
    %cst_70 = arith.constant -1.000000e+00 : f32
    %cst_71 = arith.constant 1.000000e+00 : f32
    %338 = vector.broadcast %cst_70 : f32 to vector<2x16xf32>
    %339 = arith.maximumf %338, %337 : vector<2x16xf32>
    %340 = vector.broadcast %cst_71 : f32 to vector<2x16xf32>
    %341 = arith.minimumf %340, %339 : vector<2x16xf32>
    %342 = arith.truncf %341 : vector<2x16xf32> to vector<2x16xbf16>
    %cst_72 = arith.constant dense<0.000000e+00> : vector<2x128xf32>
    %343 = tpu.matmul %342, %3, %cst_72 {dimension_numbers = #tpu.dot_dimension_numbers<[1], [0], [0], [1], [0, 0, 1, 1], [], []>} : vector<2x16xbf16>, vector<16x128xbf16>, vector<2x128xf32> -> vector<2x128xf32>
    %344 = arith.truncf %334 : vector<2x32xf32> to vector<2x32xbf16>
    %cst_73 = arith.constant dense<0.000000e+00> : vector<2x128xf32>
    %345 = tpu.matmul %344, %4, %cst_73 {dimension_numbers = #tpu.dot_dimension_numbers<[1], [0], [0], [1], [0, 0, 1, 1], [], []>} : vector<2x32xbf16>, vector<32x128xbf16>, vector<2x128xf32> -> vector<2x128xf32>
    %346 = arith.addf %343, %345 : vector<2x128xf32>
    %347 = arith.addf %346, %13 : vector<2x128xf32>
    %348 = vector.extract_strided_slice %347 {offsets = [0, 0], sizes = [2, 96], strides = [1, 1]} : vector<2x128xf32> to vector<2x96xf32>
    %349 = arith.negf %348 : vector<2x96xf32>
    %350 = math.exp %349 : vector<2x96xf32>
    %cst_74 = arith.constant 1.000000e+00 : f32
    %351 = vector.broadcast %cst_74 : f32 to vector<2x96xf32>
    %352 = arith.addf %351, %350 : vector<2x96xf32>
    %353 = arith.divf %351, %352 : vector<2x96xf32>
    %354 = vector.extract_strided_slice %353 {offsets = [0, 0], sizes = [2, 32], strides = [1, 1]} : vector<2x96xf32> to vector<2x32xf32>
    %355 = vector.extract_strided_slice %353 {offsets = [0, 32], sizes = [2, 32], strides = [1, 1]} : vector<2x96xf32> to vector<2x32xf32>
    %356 = vector.extract_strided_slice %353 {offsets = [0, 64], sizes = [2, 32], strides = [1, 1]} : vector<2x96xf32> to vector<2x32xf32>
    %357 = vector.extract_strided_slice %347 {offsets = [0, 96], sizes = [2, 32], strides = [1, 1]} : vector<2x128xf32> to vector<2x32xf32>
    %358 = math.tanh %357 : vector<2x32xf32>
    %359 = arith.mulf %355, %332 : vector<2x32xf32>
    %360 = arith.mulf %354, %358 : vector<2x32xf32>
    %361 = arith.addf %359, %360 : vector<2x32xf32>
    %362 = math.tanh %361 : vector<2x32xf32>
    %363 = arith.mulf %356, %362 : vector<2x32xf32>
    %364 = arith.truncf %363 : vector<2x32xf32> to vector<2x32xbf16>
    %cst_75 = arith.constant dense<0.000000e+00> : vector<2x16xf32>
    %365 = tpu.matmul %364, %5, %cst_75 {dimension_numbers = #tpu.dot_dimension_numbers<[1], [0], [0], [1], [0, 0, 1, 1], [], []>} : vector<2x32xbf16>, vector<32x16xbf16>, vector<2x16xf32> -> vector<2x16xf32>
    %366 = arith.addf %365, %16 : vector<2x16xf32>
    %cst_76 = arith.constant -1.000000e+00 : f32
    %cst_77 = arith.constant 1.000000e+00 : f32
    %367 = vector.broadcast %cst_76 : f32 to vector<2x16xf32>
    %368 = arith.maximumf %367, %366 : vector<2x16xf32>
    %369 = vector.broadcast %cst_77 : f32 to vector<2x16xf32>
    %370 = arith.minimumf %369, %368 : vector<2x16xf32>
    %371 = tpu.concatenate %283, %312, %341, %370 in 1 : vector<2x16xf32>, vector<2x16xf32>, vector<2x16xf32>, vector<2x16xf32> -> vector<2x64xf32>
    %c0_78 = arith.constant 0 : index
    %c0_79 = arith.constant 0 : index
    %372 = vector.load %arg11[%c0_78, %c0_79] : memref<2x64xf32, #tpu.memory_space<vmem>>, vector<2x64xf32>
    tpu.vector_store %arg11[%c0_78, %c0_79], %371 {strides = array<i32>} : memref<2x64xf32, #tpu.memory_space<vmem>>, vector<2x64xf32>,
    return
  }
}

</mosaic_0001>

<llo_original>
// kernel: tpu_custom_call.1
$region0: #{tpu_custom_call.1}
  #allocation0 [shape = 'u32[]', space=smem, size = 0x4, offset = 0x4, fixed_abs, tag = 'smem constant byte address 0x4 - core index']
  #allocation1 [shape = 'u32[72,128]{1,0:T(1,128)}', space=vmem, size = 0x9000, scoped, tag = 'internal scratch']
  %s0 = inlined_call_operand.vmem [shape: f32[2,8,16], index: 0, kind: input, shape index: {}]
  %s1 = inlined_call_operand.hbm [shape: f32[2,8,16], index: 1, kind: input, shape index: {}]
  %s2 = inlined_call_operand.hbm [shape: bf16[16,256], index: 2, kind: input, shape index: {}]
  %s3 = inlined_call_operand.hbm [shape: bf16[16,256], index: 3, kind: input, shape index: {}]
  %s4 = inlined_call_operand.hbm [shape: bf16[64,256], index: 4, kind: input, shape index: {}]
  %s5 = inlined_call_operand.hbm [shape: f32[1,256], index: 5, kind: input, shape index: {}]
  %s6 = inlined_call_operand.vmem [shape: bf16[16,128], index: 6, kind: input, shape index: {}]
  %s7 = inlined_call_operand.hbm [shape: bf16[32,128], index: 7, kind: input, shape index: {}]
  %s8 = inlined_call_operand.hbm [shape: f32[1,128], index: 8, kind: input, shape index: {}]
  %s9 = inlined_call_operand.vmem [shape: bf16[32,16], index: 9, kind: input, shape index: {}]
  %s10 = inlined_call_operand.vmem [shape: f32[1,16], index: 10, kind: input, shape index: {}]
  %s11 = inlined_call_operand.hbm [shape: f32[2,64], index: 11, kind: output, shape index: {}]
  %s12 = sld [smem:[#allocation0]]
  $region82: #{tpu_custom_call.1} parent=0
    _
  %s14 = ssub.s32 1, %s12
  %s15 = scalar_select 0, %s14, %s12
  $region1: #{tpu_custom_call.1} parent=0
    #allocation2 [shape = 'u8[8192]{0}', space=vmem, size = 0x2000, scoped, tag = 'input window, operand 1, single buffered']
    #allocation3 [shape = 's32[1]{0}', space=sflag, size = 0x4, scoped, tag = 'scoped memory for tpu_custom_call.1']
    #allocation4 [shape = 's32[1]{0}', space=sflag, size = 0x4, scoped, tag = 'scoped memory for tpu_custom_call.1']
    #allocation5 [shape = 'u8[8192]{0}', space=vmem, size = 0x2000, scoped, tag = 'input window, operand 2, single buffered']
    #allocation6 [shape = 's32[1]{0}', space=sflag, size = 0x4, scoped, tag = 'scoped memory for tpu_custom_call.1']
    #allocation7 [shape = 'u8[8192]{0}', space=vmem, size = 0x2000, scoped, tag = 'input window, operand 3, single buffered']
    #allocation8 [shape = 'u8[32768]{0}', space=vmem, size = 0x8000, scoped, tag = 'input window, operand 4, single buffered']
    #allocation9 [shape = 's32[1]{0}', space=sflag, size = 0x4, scoped, tag = 'scoped memory for tpu_custom_call.1']
    #allocation10 [shape = 'u8[1024]{0}', space=vmem, size = 0x400, scoped, tag = 'input window, operand 5, single buffered']
    #allocation11 [shape = 'u8[8192]{0}', space=vmem, size = 0x2000, scoped, tag = 'input window, operand 7, single buffered']
    #allocation12 [shape = 's32[1]{0}', space=sflag, size = 0x4, scoped, tag = 'scoped memory for tpu_custom_call.1']
    #allocation13 [shape = 'u8[512]{0}', space=vmem, size = 0x400, scoped, tag = 'input window, operand 8, single buffered']
    #allocation14 [shape = 'u8[1024]{0}', space=vmem, size = 0x400, scoped, tag = 'output window, operand 0, single buffered']
    %16 = vsyncpa [#allocation3], 0
    %17 = vsyncpa [#allocation6], 0
    %18 = vsyncpa [#allocation9], 0
    %19 = vsyncpa [#allocation12], 0
    %20 = vsyncpa [#allocation4], 0
    // Predicated region
    $region2: #{tpu_custom_call.1} parent=1 // pred_check
      _
    $region3: #{tpu_custom_call.1} parent=1 // pred_check_branch
      %22 = sbr.rel (0) target = $region5
    $region4: #{tpu_custom_call.1} parent=1 // pred_region
      _
    $region5: #{tpu_custom_call.1} parent=1 // pred_fallthru
      _
    // Predicated region
    $region6: #{tpu_custom_call.1} parent=1 // pred_check
      _
    $region7: #{tpu_custom_call.1} parent=1 // pred_check_branch
      %24 = sbr.rel (0) target = $region9
    $region8: #{tpu_custom_call.1} parent=1 // pred_region
      %26 = vsyncadd [#allocation3], 0
      %s27 = sshll.u32 %s1, 4
      %s28 = int_to_ptr.hbm [resolvable:$true] %s27
      %s29 = sshll.u32 [#allocation2], 4
      %s30 = int_to_ptr.vmem [resolvable:$true] %s29
      %35 = dma.hbm_to_vmem [thread:$0]  %s28, 256, %s30, [#allocation3], 128, 128, 8
    $region9: #{tpu_custom_call.1} parent=1 // pred_fallthru
      _
    // Predicated region
    $region10: #{tpu_custom_call.1} parent=1 // pred_check
      _
    $region11: #{tpu_custom_call.1} parent=1 // pred_check_branch
      %37 = sbr.rel (0) target = $region13
    $region12: #{tpu_custom_call.1} parent=1 // pred_region
      %39 = vsyncadd [#allocation6], 0
      %s40 = sshll.u32 %s2, 4
      %s41 = int_to_ptr.hbm [resolvable:$true] %s40
      %s42 = sshll.u32 [#allocation5], 4
      %s43 = int_to_ptr.vmem [resolvable:$true] %s42
      %48 = dma.hbm_to_vmem [thread:$0]  %s41, 256, %s43, [#allocation6], 128, 128, 8
    $region13: #{tpu_custom_call.1} parent=1 // pred_fallthru
      _
    // Predicated region
    $region14: #{tpu_custom_call.1} parent=1 // pred_check
      _
    $region15: #{tpu_custom_call.1} parent=1 // pred_check_branch
      %50 = sbr.rel (0) target = $region17
    $region16: #{tpu_custom_call.1} parent=1 // pred_region
      %52 = vsyncadd [#allocation6], 0
      %s53 = sshll.u32 %s3, 4
      %s54 = int_to_ptr.hbm [resolvable:$true] %s53
      %s55 = sshll.u32 [#allocation7], 4
      %s56 = int_to_ptr.vmem [resolvable:$true] %s55
      %61 = dma.hbm_to_vmem [thread:$0]  %s54, 256, %s56, [#allocation6], 128, 128, 8
    $region17: #{tpu_custom_call.1} parent=1 // pred_fallthru
      _
    // Predicated region
    $region18: #{tpu_custom_call.1} parent=1 // pred_check
      _
    $region19: #{tpu_custom_call.1} parent=1 // pred_check_branch
      %63 = sbr.rel (0) target = $region21
    $region20: #{tpu_custom_call.1} parent=1 // pred_region
      %65 = vsyncadd [#allocation9], 0
      %s66 = sshll.u32 %s4, 4
      %s67 = int_to_ptr.hbm [resolvable:$true] %s66
      %s68 = sshll.u32 [#allocation8], 4
      %s69 = int_to_ptr.vmem [resolvable:$true] %s68
      %74 = dma.hbm_to_vmem [thread:$0]  %s67, 1024, %s69, [#allocation9], 128, 128, 8
    $region21: #{tpu_custom_call.1} parent=1 // pred_fallthru
      _
    // Predicated region
    $region22: #{tpu_custom_call.1} parent=1 // pred_check
      _
    $region23: #{tpu_custom_call.1} parent=1 // pred_check_branch
      %76 = sbr.rel (0) target = $region25
    $region24: #{tpu_custom_call.1} parent=1 // pred_region
      %78 = vsyncadd [#allocation9], 0
      %s80 = sshll.u32 %s5, 4
      %s81 = int_to_ptr.hbm [resolvable:$true] %s80
      %s82 = sshll.u32 [#allocation10], 4
      %s83 = int_to_ptr.vmem [resolvable:$true] %s82
      %85 = dma.hbm_to_vmem [thread:$0]  %s81, 32, %s83, [#allocation9]
    $region25: #{tpu_custom_call.1} parent=1 // pred_fallthru
      _
    // Predicated region
    $region26: #{tpu_custom_call.1} parent=1 // pred_check
      _
    $region27: #{tpu_custom_call.1} parent=1 // pred_check_branch
      %87 = sbr.rel (0) target = $region29
    $region28: #{tpu_custom_call.1} parent=1 // pred_region
      _
    $region29: #{tpu_custom_call.1} parent=1 // pred_fallthru
      _
    // Predicated region
    $region30: #{tpu_custom_call.1} parent=1 // pred_check
      _
    $region31: #{tpu_custom_call.1} parent=1 // pred_check_branch
      %89 = sbr.rel (0) target = $region33
    $region32: #{tpu_custom_call.1} parent=1 // pred_region
      %91 = vsyncadd [#allocation12], 0
      %s92 = sshll.u32 %s7, 4
      %s93 = int_to_ptr.hbm [resolvable:$true] %s92
      %s94 = sshll.u32 [#allocation11], 4
      %s95 = int_to_ptr.vmem [resolvable:$true] %s94
      %100 = dma.hbm_to_vmem [thread:$0]  %s93, 256, %s95, [#allocation12], 64, 64, 4
    $region33: #{tpu_custom_call.1} parent=1 // pred_fallthru
      _
    // Predicated region
    $region34: #{tpu_custom_call.1} parent=1 // pred_check
      _
    $region35: #{tpu_custom_call.1} parent=1 // pred_check_branch
      %102 = sbr.rel (0) target = $region37
    $region36: #{tpu_custom_call.1} parent=1 // pred_region
      %104 = vsyncadd [#allocation12], 0
      %s106 = sshll.u32 %s8, 4
      %s107 = int_to_ptr.hbm [resolvable:$true] %s106
      %s108 = sshll.u32 [#allocation13], 4
      %s109 = int_to_ptr.vmem [resolvable:$true] %s108
      %111 = dma.hbm_to_vmem [thread:$0]  %s107, 16, %s109, [#allocation12]
    $region37: #{tpu_custom_call.1} parent=1 // pred_fallthru
      _
    // Predicated region
    $region38: #{tpu_custom_call.1} parent=1 // pred_check
      _
    $region39: #{tpu_custom_call.1} parent=1 // pred_check_branch
      %113 = sbr.rel (0) target = $region41
    $region40: #{tpu_custom_call.1} parent=1 // pred_region
      _
    $region41: #{tpu_custom_call.1} parent=1 // pred_fallthru
      _
    // Predicated region
    $region42: #{tpu_custom_call.1} parent=1 // pred_check
      _
    $region43: #{tpu_custom_call.1} parent=1 // pred_check_branch
      %115 = sbr.rel (0) target = $region45
    $region44: #{tpu_custom_call.1} parent=1 // pred_region
      _
    $region45: #{tpu_custom_call.1} parent=1 // pred_fallthru
      _
    // Predicated region
    $region46: #{tpu_custom_call.1} parent=1 // pred_check
      _
    $region47: #{tpu_custom_call.1} parent=1 // pred_check_branch
      %117 = sbr.rel (0) target = $region49
    $region48: #{tpu_custom_call.1} parent=1 // pred_region
      %119 = dma.done [#allocation3], 256
    $region49: #{tpu_custom_call.1} parent=1 // pred_fallthru
      _
    // Predicated region
    $region50: #{tpu_custom_call.1} parent=1 // pred_check
      _
    $region51: #{tpu_custom_call.1} parent=1 // pred_check_branch
      %121 = sbr.rel (0) target = $region53
    $region52: #{tpu_custom_call.1} parent=1 // pred_region
      %123 = dma.done [#allocation6], 256
    $region53: #{tpu_custom_call.1} parent=1 // pred_fallthru
      _
    // Predicated region
    $region54: #{tpu_custom_call.1} parent=1 // pred_check
      _
    $region55: #{tpu_custom_call.1} parent=1 // pred_check_branch
      %125 = sbr.rel (0) target = $region57
    $region56: #{tpu_custom_call.1} parent=1 // pred_region
      %127 = dma.done [#allocation6], 256
    $region57: #{tpu_custom_call.1} parent=1 // pred_fallthru
      _
    // Predicated region
    $region58: #{tpu_custom_call.1} parent=1 // pred_check
      _
    $region59: #{tpu_custom_call.1} parent=1 // pred_check_branch
      %129 = sbr.rel (0) target = $region61
    $region60: #{tpu_custom_call.1} parent=1 // pred_region
      %131 = dma.done [#allocation9], 1024
    $region61: #{tpu_custom_call.1} parent=1 // pred_fallthru
      _
    // Predicated region
    $region62: #{tpu_custom_call.1} parent=1 // pred_check
      _
    $region63: #{tpu_custom_call.1} parent=1 // pred_check_branch
      %133 = sbr.rel (0) target = $region65
    $region64: #{tpu_custom_call.1} parent=1 // pred_region
      %135 = dma.done [#allocation9], 32
    $region65: #{tpu_custom_call.1} parent=1 // pred_fallthru
      _
    // Predicated region
    $region66: #{tpu_custom_call.1} parent=1 // pred_check
      _
    $region67: #{tpu_custom_call.1} parent=1 // pred_check_branch
      %137 = sbr.rel (0) target = $region69
    $region68: #{tpu_custom_call.1} parent=1 // pred_region
      %139 = dma.done [#allocation12], 256
    $region69: #{tpu_custom_call.1} parent=1 // pred_fallthru
      _
    // Predicated region
    $region70: #{tpu_custom_call.1} parent=1 // pred_check
      _
    $region71: #{tpu_custom_call.1} parent=1 // pred_check_branch
      %141 = sbr.rel (0) target = $region73
    $region72: #{tpu_custom_call.1} parent=1 // pred_region
      %143 = dma.done [#allocation12], 16
    $region73: #{tpu_custom_call.1} parent=1 // pred_fallthru
      _
    %v145 = vld [vmem:[#allocation5] sm:$0xff]
    %v146 = vld [vmem:[#allocation5 + $0x8] sm:$0xff]
    %v147 = vld [vmem:[#allocation7] sm:$0xff]
    %v148 = vld [vmem:[#allocation7 + $0x8] sm:$0xff]
    %v149 = vld [vmem:[#allocation8] sm:$0xff]
    %v150 = vld [vmem:[#allocation8 + $0x8] sm:$0xff]
    %v151 = vld [vmem:[#allocation8 + $0x10] sm:$0xff]
    %v152 = vld [vmem:[#allocation8 + $0x18] sm:$0xff]
    %v153 = vld [vmem:[#allocation8 + $0x20] sm:$0xff]
    %v154 = vld [vmem:[#allocation8 + $0x28] sm:$0xff]
    %v155 = vld [vmem:[#allocation8 + $0x30] sm:$0xff]
    %v156 = vld [vmem:[#allocation8 + $0x38] sm:$0xff]
    %v157 = vld [vmem:[%s6] sm:$0xf]
    %v158 = vld [vmem:[%s6 + $0x4] sm:$0xf]
    %v159 = vld [vmem:[#allocation11] sm:$0xf]
    %v160 = vld [vmem:[#allocation11 + $0x4] sm:$0xf]
    %v161 = vld [vmem:[#allocation11 + $0x8] sm:$0xf]
    %v162 = vld [vmem:[#allocation11 + $0xc] sm:$0xf]
    %v163 = vld [vmem:[%s9] sm:$0xf]
    %v164 = vld [vmem:[%s9 + $0x4] sm:$0xf]
    %v165 = vld [vmem:[%s9 + $0x8] sm:$0xf]
    %v166 = vld [vmem:[%s9 + $0xc] sm:$0xf]
    %v167 = vld [vmem:[%s0] sm:$0xff]
    %v168 = vld [vmem:[%s0 + $0x8] sm:$0xff]
    %v169 = vld [vmem:[#allocation2] sm:$0xff]
    %v170 = vld [vmem:[#allocation2 + $0x8] sm:$0xff]
    %v171 = vld [vmem:[#allocation10] sm:$0x3]
    %v173 = vperm.slane %v171, 0
    %v174 = vperm.slane %v171, 1
    %v177 = vld [vmem:[#allocation13] sm:$0x1]
    %v179 = vperm.slane %v177, 0
    %v181 = vld [vmem:[%s10] sm:$0x1]
    %v183 = vperm.slane %v181, 0
    %v185 = vpack.c.bf16 %v167, %v167
    %v186 = vpack.c.bf16 %v168, %v168
    %v187 = vpack.c.bf16 %v169, %v169
    %v188 = vpack.c.bf16 %v170, %v170
    %v191 = vunpack.c.l.b16 %v187
    %v192 = vunpack.c.l.b16 %v188
    %v193 = vrot.slane %v192, 7
    %vm194 = vcmask 1041409
    %v195 = vsel %vm194, %v193, %v191
    %v196 = vpack.c.b16 %v195, %v195
    %v199 = vunpack.c.l.b16 %v147
    %v200 = vunpack.c.h.b16 %v147
    %v201 = vunpack.c.l.b16 %v148
    %v202 = vunpack.c.h.b16 %v148
    %v203 = vpack.c.b16 %v201, %v199
    %v204 = vpack.c.b16 %v202, %v200
    %vm207 = vcmask 130048
    %v209 = vsel %vm207, %v196, 0
    %211 = vmatpush.bf16.msra.mxu0 0
    %212 = vmatpush.bf16.msra.mxu0 0
    %213 = vmatpush.bf16.msra.mxu0 0
    %214 = vmatpush.bf16.msra.mxu0 0
    %215 = vmatpush.bf16.msra.mxu0 0
    %216 = vmatpush.bf16.msra.mxu0 0
    %217 = vmatpush.bf16.msra.mxu0 0
    %218 = vmatpush.bf16.msra.mxu0 %v203
    %219 = vmatmul.bf16.gmra.mxu0 %v209
    %v220 = vpop.f32.mrf.mxu0
    %v221 = vadd.f32 0.0, %v220
    %v222 = vpop.f32.mrf.mxu0
    %223 = vdwg.mxu0
    %224 = vmatpush.bf16.msra.mxu0 0
    %225 = vmatpush.bf16.msra.mxu0 0
    %226 = vmatpush.bf16.msra.mxu0 0
    %227 = vmatpush.bf16.msra.mxu0 0
    %228 = vmatpush.bf16.msra.mxu0 0
    %229 = vmatpush.bf16.msra.mxu0 0
    %230 = vmatpush.bf16.msra.mxu0 0
    %231 = vmatpush.bf16.msra.mxu0 %v204
    %232 = vmatmul.bf16.gmra.mxu0 %v209
    %v233 = vpop.f32.mrf.mxu0
    %v234 = vadd.f32 0.0, %v233
    %v235 = vpop.f32.mrf.mxu0
    %236 = vdwg.mxu0
    %v239 = vunpack.c.l.b16 %v185
    %v240 = vunpack.c.l.b16 %v186
    %v241 = vrot.slane %v240, 7
    %v242 = vsel %vm194, %v241, %v239
    %v243 = vpack.c.b16 %v242, %v242
    %v246 = vunpack.c.l.b16 %v145
    %v247 = vunpack.c.h.b16 %v145
    %v248 = vunpack.c.l.b16 %v146
    %v249 = vunpack.c.h.b16 %v146
    %v250 = vpack.c.b16 %v248, %v246
    %v251 = vpack.c.b16 %v249, %v247
    %v255 = vsel %vm207, %v243, 0
    %257 = vmatpush.bf16.msra.mxu0 0
    %258 = vmatpush.bf16.msra.mxu0 0
    %259 = vmatpush.bf16.msra.mxu0 0
    %260 = vmatpush.bf16.msra.mxu0 0
    %261 = vmatpush.bf16.msra.mxu0 0
    %262 = vmatpush.bf16.msra.mxu0 0
    %263 = vmatpush.bf16.msra.mxu0 0
    %264 = vmatpush.bf16.msra.mxu0 %v250
    %265 = vmatmul.bf16.gmra.mxu0 %v255
    %v266 = vpop.f32.mrf.mxu0
    %v267 = vadd.f32 %v221, %v266
    %v268 = vpop.f32.mrf.mxu0
    %269 = vdwg.mxu0
    %270 = vmatpush.bf16.msra.mxu0 0
    %271 = vmatpush.bf16.msra.mxu0 0
    %272 = vmatpush.bf16.msra.mxu0 0
    %273 = vmatpush.bf16.msra.mxu0 0
    %274 = vmatpush.bf16.msra.mxu0 0
    %275 = vmatpush.bf16.msra.mxu0 0
    %276 = vmatpush.bf16.msra.mxu0 0
    %277 = vmatpush.bf16.msra.mxu0 %v251
    %278 = vmatmul.bf16.gmra.mxu0 %v255
    %v279 = vpop.f32.mrf.mxu0
    %v280 = vadd.f32 %v234, %v279
    %v281 = vpop.f32.mrf.mxu0
    %282 = vdwg.mxu0
    %v283 = vadd.f32 %v267, %v173
    %v284 = vadd.f32 %v280, %v174
    %v285 = vrot.slane %v191, 1
    %v286 = vsel %vm194, %v192, %v285
    %v287 = vpack.c.b16 %v286, %v286
    %v289 = vsel %vm207, %v287, 0
    %291 = vmatpush.bf16.msra.mxu0 0
    %292 = vmatpush.bf16.msra.mxu0 0
    %293 = vmatpush.bf16.msra.mxu0 0
    %294 = vmatpush.bf16.msra.mxu0 0
    %295 = vmatpush.bf16.msra.mxu0 0
    %296 = vmatpush.bf16.msra.mxu0 0
    %297 = vmatpush.bf16.msra.mxu0 0
    %298 = vmatpush.bf16.msra.mxu0 %v203
    %299 = vmatmul.bf16.gmra.mxu0 %v289
    %v300 = vpop.f32.mrf.mxu0
    %v301 = vadd.f32 0.0, %v300
    %v302 = vpop.f32.mrf.mxu0
    %303 = vdwg.mxu0
    %304 = vmatpush.bf16.msra.mxu0 0
    %305 = vmatpush.bf16.msra.mxu0 0
    %306 = vmatpush.bf16.msra.mxu0 0
    %307 = vmatpush.bf16.msra.mxu0 0
    %308 = vmatpush.bf16.msra.mxu0 0
    %309 = vmatpush.bf16.msra.mxu0 0
    %310 = vmatpush.bf16.msra.mxu0 0
    %311 = vmatpush.bf16.msra.mxu0 %v204
    %312 = vmatmul.bf16.gmra.mxu0 %v289
    %v313 = vpop.f32.mrf.mxu0
    %v314 = vadd.f32 0.0, %v313
    %v315 = vpop.f32.mrf.mxu0
    %316 = vdwg.mxu0
    %v317 = vrot.slane %v239, 1
    %v318 = vsel %vm194, %v240, %v317
    %v319 = vpack.c.b16 %v318, %v318
    %v321 = vsel %vm207, %v319, 0
    %323 = vmatpush.bf16.msra.mxu0 0
    %324 = vmatpush.bf16.msra.mxu0 0
    %325 = vmatpush.bf16.msra.mxu0 0
    %326 = vmatpush.bf16.msra.mxu0 0
    %327 = vmatpush.bf16.msra.mxu0 0
    %328 = vmatpush.bf16.msra.mxu0 0
    %329 = vmatpush.bf16.msra.mxu0 0
    %330 = vmatpush.bf16.msra.mxu0 %v250
    %331 = vmatmul.bf16.gmra.mxu0 %v321
    %v332 = vpop.f32.mrf.mxu0
    %v333 = vadd.f32 %v301, %v332
    %v334 = vpop.f32.mrf.mxu0
    %335 = vdwg.mxu0
    %336 = vmatpush.bf16.msra.mxu0 0
    %337 = vmatpush.bf16.msra.mxu0 0
    %338 = vmatpush.bf16.msra.mxu0 0
    %339 = vmatpush.bf16.msra.mxu0 0
    %340 = vmatpush.bf16.msra.mxu0 0
    %341 = vmatpush.bf16.msra.mxu0 0
    %342 = vmatpush.bf16.msra.mxu0 0
    %343 = vmatpush.bf16.msra.mxu0 %v251
    %344 = vmatmul.bf16.gmra.mxu0 %v321
    %v345 = vpop.f32.mrf.mxu0
    %v346 = vadd.f32 %v314, %v345
    %v347 = vpop.f32.mrf.mxu0
    %348 = vdwg.mxu0
    %v349 = vadd.f32 %v333, %v173
    %v350 = vadd.f32 %v346, %v174
    %v351 = vrot.slane %v191, 2
    %v352 = vrot.slane %v192, 1
    %v353 = vsel %vm194, %v352, %v351
    %v354 = vpack.c.b16 %v353, %v353
    %v356 = vsel %vm207, %v354, 0
    %358 = vmatpush.bf16.msra.mxu0 0
    %359 = vmatpush.bf16.msra.mxu0 0
    %360 = vmatpush.bf16.msra.mxu0 0
    %361 = vmatpush.bf16.msra.mxu0 0
    %362 = vmatpush.bf16.msra.mxu0 0
    %363 = vmatpush.bf16.msra.mxu0 0
    %364 = vmatpush.bf16.msra.mxu0 0
    %365 = vmatpush.bf16.msra.mxu0 %v203
    %366 = vmatmul.bf16.gmra.mxu0 %v356
    %v367 = vpop.f32.mrf.mxu0
    %v368 = vadd.f32 0.0, %v367
    %v369 = vpop.f32.mrf.mxu0
    %370 = vdwg.mxu0
    %371 = vmatpush.bf16.msra.mxu0 0
    %372 = vmatpush.bf16.msra.mxu0 0
    %373 = vmatpush.bf16.msra.mxu0 0
    %374 = vmatpush.bf16.msra.mxu0 0
    %375 = vmatpush.bf16.msra.mxu0 0
    %376 = vmatpush.bf16.msra.mxu0 0
    %377 = vmatpush.bf16.msra.mxu0 0
    %378 = vmatpush.bf16.msra.mxu0 %v204
    %379 = vmatmul.bf16.gmra.mxu0 %v356
    %v380 = vpop.f32.mrf.mxu0
    %v381 = vadd.f32 0.0, %v380
    %v382 = vpop.f32.mrf.mxu0
    %383 = vdwg.mxu0
    %v384 = vrot.slane %v239, 2
    %v385 = vrot.slane %v240, 1
    %v386 = vsel %vm194, %v385, %v384
    %v387 = vpack.c.b16 %v386, %v386
    %v389 = vsel %vm207, %v387, 0
    %391 = vmatpush.bf16.msra.mxu0 0
    %392 = vmatpush.bf16.msra.mxu0 0
    %393 = vmatpush.bf16.msra.mxu0 0
    %394 = vmatpush.bf16.msra.mxu0 0
    %395 = vmatpush.bf16.msra.mxu0 0
    %396 = vmatpush.bf16.msra.mxu0 0
    %397 = vmatpush.bf16.msra.mxu0 0
    %398 = vmatpush.bf16.msra.mxu0 %v250
    %399 = vmatmul.bf16.gmra.mxu0 %v389
    %v400 = vpop.f32.mrf.mxu0
    %v401 = vadd.f32 %v368, %v400
    %v402 = vpop.f32.mrf.mxu0
    %403 = vdwg.mxu0
    %404 = vmatpush.bf16.msra.mxu0 0
    %405 = vmatpush.bf16.msra.mxu0 0
    %406 = vmatpush.bf16.msra.mxu0 0
    %407 = vmatpush.bf16.msra.mxu0 0
    %408 = vmatpush.bf16.msra.mxu0 0
    %409 = vmatpush.bf16.msra.mxu0 0
    %410 = vmatpush.bf16.msra.mxu0 0
    %411 = vmatpush.bf16.msra.mxu0 %v251
    %412 = vmatmul.bf16.gmra.mxu0 %v389
    %v413 = vpop.f32.mrf.mxu0
    %v414 = vadd.f32 %v381, %v413
    %v415 = vpop.f32.mrf.mxu0
    %416 = vdwg.mxu0
    %v417 = vadd.f32 %v401, %v173
    %v418 = vadd.f32 %v414, %v174
    %v419 = vrot.slane %v191, 3
    %v420 = vrot.slane %v192, 2
    %v421 = vsel %vm194, %v420, %v419
    %v422 = vpack.c.b16 %v421, %v421
    %v424 = vsel %vm207, %v422, 0
    %426 = vmatpush.bf16.msra.mxu0 0
    %427 = vmatpush.bf16.msra.mxu0 0
    %428 = vmatpush.bf16.msra.mxu0 0
    %429 = vmatpush.bf16.msra.mxu0 0
    %430 = vmatpush.bf16.msra.mxu0 0
    %431 = vmatpush.bf16.msra.mxu0 0
    %432 = vmatpush.bf16.msra.mxu0 0
    %433 = vmatpush.bf16.msra.mxu0 %v203
    %434 = vmatmul.bf16.gmra.mxu0 %v424
    %v435 = vpop.f32.mrf.mxu0
    %v436 = vadd.f32 0.0, %v435
    %v437 = vpop.f32.mrf.mxu0
    %438 = vdwg.mxu0
    %439 = vmatpush.bf16.msra.mxu0 0
    %440 = vmatpush.bf16.msra.mxu0 0
    %441 = vmatpush.bf16.msra.mxu0 0
    %442 = vmatpush.bf16.msra.mxu0 0
    %443 = vmatpush.bf16.msra.mxu0 0
    %444 = vmatpush.bf16.msra.mxu0 0
    %445 = vmatpush.bf16.msra.mxu0 0
    %446 = vmatpush.bf16.msra.mxu0 %v204
    %447 = vmatmul.bf16.gmra.mxu0 %v424
    %v448 = vpop.f32.mrf.mxu0
    %v449 = vadd.f32 0.0, %v448
    %v450 = vpop.f32.mrf.mxu0
    %451 = vdwg.mxu0
    %v452 = vrot.slane %v239, 3
    %v453 = vrot.slane %v240, 2
    %v454 = vsel %vm194, %v453, %v452
    %v455 = vpack.c.b16 %v454, %v454
    %v457 = vsel %vm207, %v455, 0
    %459 = vmatpush.bf16.msra.mxu0 0
    %460 = vmatpush.bf16.msra.mxu0 0
    %461 = vmatpush.bf16.msra.mxu0 0
    %462 = vmatpush.bf16.msra.mxu0 0
    %463 = vmatpush.bf16.msra.mxu0 0
    %464 = vmatpush.bf16.msra.mxu0 0
    %465 = vmatpush.bf16.msra.mxu0 0
    %466 = vmatpush.bf16.msra.mxu0 %v250
    %467 = vmatmul.bf16.gmra.mxu0 %v457
    %v468 = vpop.f32.mrf.mxu0
    %v469 = vadd.f32 %v436, %v468
    %v470 = vpop.f32.mrf.mxu0
    %471 = vdwg.mxu0
    %472 = vmatpush.bf16.msra.mxu0 0
    %473 = vmatpush.bf16.msra.mxu0 0
    %474 = vmatpush.bf16.msra.mxu0 0
    %475 = vmatpush.bf16.msra.mxu0 0
    %476 = vmatpush.bf16.msra.mxu0 0
    %477 = vmatpush.bf16.msra.mxu0 0
    %478 = vmatpush.bf16.msra.mxu0 0
    %479 = vmatpush.bf16.msra.mxu0 %v251
    %480 = vmatmul.bf16.gmra.mxu0 %v457
    %v481 = vpop.f32.mrf.mxu0
    %v482 = vadd.f32 %v449, %v481
    %v483 = vpop.f32.mrf.mxu0
    %484 = vdwg.mxu0
    %v485 = vadd.f32 %v469, %v173
    %v486 = vadd.f32 %v482, %v174
    %v487 = vrot.slane %v191, 4
    %v488 = vrot.slane %v192, 3
    %v489 = vsel %vm194, %v488, %v487
    %v490 = vpack.c.b16 %v489, %v489
    %v492 = vsel %vm207, %v490, 0
    %494 = vmatpush.bf16.msra.mxu0 0
    %495 = vmatpush.bf16.msra.mxu0 0
    %496 = vmatpush.bf16.msra.mxu0 0
    %497 = vmatpush.bf16.msra.mxu0 0
    %498 = vmatpush.bf16.msra.mxu0 0
    %499 = vmatpush.bf16.msra.mxu0 0
    %500 = vmatpush.bf16.msra.mxu0 0
    %501 = vmatpush.bf16.msra.mxu0 %v203
    %502 = vmatmul.bf16.gmra.mxu0 %v492
    %v503 = vpop.f32.mrf.mxu0
    %v504 = vadd.f32 0.0, %v503
    %v505 = vpop.f32.mrf.mxu0
    %506 = vdwg.mxu0
    %507 = vmatpush.bf16.msra.mxu0 0
    %508 = vmatpush.bf16.msra.mxu0 0
    %509 = vmatpush.bf16.msra.mxu0 0
    %510 = vmatpush.bf16.msra.mxu0 0
    %511 = vmatpush.bf16.msra.mxu0 0
    %512 = vmatpush.bf16.msra.mxu0 0
    %513 = vmatpush.bf16.msra.mxu0 0
    %514 = vmatpush.bf16.msra.mxu0 %v204
    %515 = vmatmul.bf16.gmra.mxu0 %v492
    %v516 = vpop.f32.mrf.mxu0
    %v517 = vadd.f32 0.0, %v516
    %v518 = vpop.f32.mrf.mxu0
    %519 = vdwg.mxu0
    %v520 = vrot.slane %v239, 4
    %v521 = vrot.slane %v240, 3
    %v522 = vsel %vm194, %v521, %v520
    %v523 = vpack.c.b16 %v522, %v522
    %v525 = vsel %vm207, %v523, 0
    %527 = vmatpush.bf16.msra.mxu0 0
    %528 = vmatpush.bf16.msra.mxu0 0
    %529 = vmatpush.bf16.msra.mxu0 0
    %530 = vmatpush.bf16.msra.mxu0 0
    %531 = vmatpush.bf16.msra.mxu0 0
    %532 = vmatpush.bf16.msra.mxu0 0
    %533 = vmatpush.bf16.msra.mxu0 0
    %534 = vmatpush.bf16.msra.mxu0 %v250
    %535 = vmatmul.bf16.gmra.mxu0 %v525
    %v536 = vpop.f32.mrf.mxu0
    %v537 = vadd.f32 %v504, %v536
    %v538 = vpop.f32.mrf.mxu0
    %539 = vdwg.mxu0
    %540 = vmatpush.bf16.msra.mxu0 0
    %541 = vmatpush.bf16.msra.mxu0 0
    %542 = vmatpush.bf16.msra.mxu0 0
    %543 = vmatpush.bf16.msra.mxu0 0
    %544 = vmatpush.bf16.msra.mxu0 0
    %545 = vmatpush.bf16.msra.mxu0 0
    %546 = vmatpush.bf16.msra.mxu0 0
    %547 = vmatpush.bf16.msra.mxu0 %v251
    %548 = vmatmul.bf16.gmra.mxu0 %v525
    %v549 = vpop.f32.mrf.mxu0
    %v550 = vadd.f32 %v517, %v549
    %v551 = vpop.f32.mrf.mxu0
    %552 = vdwg.mxu0
    %v553 = vadd.f32 %v537, %v173
    %v554 = vadd.f32 %v550, %v174
    %v555 = vrot.slane %v191, 5
    %v556 = vrot.slane %v192, 4
    %v557 = vsel %vm194, %v556, %v555
    %v558 = vpack.c.b16 %v557, %v557
    %v560 = vsel %vm207, %v558, 0
    %562 = vmatpush.bf16.msra.mxu0 0
    %563 = vmatpush.bf16.msra.mxu0 0
    %564 = vmatpush.bf16.msra.mxu0 0
    %565 = vmatpush.bf16.msra.mxu0 0
    %566 = vmatpush.bf16.msra.mxu0 0
    %567 = vmatpush.bf16.msra.mxu0 0
    %568 = vmatpush.bf16.msra.mxu0 0
    %569 = vmatpush.bf16.msra.mxu0 %v203
    %570 = vmatmul.bf16.gmra.mxu0 %v560
    %v571 = vpop.f32.mrf.mxu0
    %v572 = vadd.f32 0.0, %v571
    %v573 = vpop.f32.mrf.mxu0
    %574 = vdwg.mxu0
    %575 = vmatpush.bf16.msra.mxu0 0
    %576 = vmatpush.bf16.msra.mxu0 0
    %577 = vmatpush.bf16.msra.mxu0 0
    %578 = vmatpush.bf16.msra.mxu0 0
    %579 = vmatpush.bf16.msra.mxu0 0
    %580 = vmatpush.bf16.msra.mxu0 0
    %581 = vmatpush.bf16.msra.mxu0 0
    %582 = vmatpush.bf16.msra.mxu0 %v204
    %583 = vmatmul.bf16.gmra.mxu0 %v560
    %v584 = vpop.f32.mrf.mxu0
    %v585 = vadd.f32 0.0, %v584
    %v586 = vpop.f32.mrf.mxu0
    %587 = vdwg.mxu0
    %v588 = vrot.slane %v239, 5
    %v589 = vrot.slane %v240, 4
    %v590 = vsel %vm194, %v589, %v588
    %v591 = vpack.c.b16 %v590, %v590
    %v593 = vsel %vm207, %v591, 0
    %595 = vmatpush.bf16.msra.mxu0 0
    %596 = vmatpush.bf16.msra.mxu0 0
    %597 = vmatpush.bf16.msra.mxu0 0
    %598 = vmatpush.bf16.msra.mxu0 0
    %599 = vmatpush.bf16.msra.mxu0 0
    %600 = vmatpush.bf16.msra.mxu0 0
    %601 = vmatpush.bf16.msra.mxu0 0
    %602 = vmatpush.bf16.msra.mxu0 %v250
    %603 = vmatmul.bf16.gmra.mxu0 %v593
    %v604 = vpop.f32.mrf.mxu0
    %v605 = vadd.f32 %v572, %v604
    %v606 = vpop.f32.mrf.mxu0
    %607 = vdwg.mxu0
    %608 = vmatpush.bf16.msra.mxu0 0
    %609 = vmatpush.bf16.msra.mxu0 0
    %610 = vmatpush.bf16.msra.mxu0 0
    %611 = vmatpush.bf16.msra.mxu0 0
    %612 = vmatpush.bf16.msra.mxu0 0
    %613 = vmatpush.bf16.msra.mxu0 0
    %614 = vmatpush.bf16.msra.mxu0 0
    %615 = vmatpush.bf16.msra.mxu0 %v251
    %616 = vmatmul.bf16.gmra.mxu0 %v593
    %v617 = vpop.f32.mrf.mxu0
    %v618 = vadd.f32 %v585, %v617
    %v619 = vpop.f32.mrf.mxu0
    %620 = vdwg.mxu0
    %v621 = vadd.f32 %v605, %v173
    %v622 = vadd.f32 %v618, %v174
    %v623 = vrot.slane %v191, 6
    %v624 = vrot.slane %v192, 5
    %v625 = vsel %vm194, %v624, %v623
    %v626 = vpack.c.b16 %v625, %v625
    %v628 = vsel %vm207, %v626, 0
    %630 = vmatpush.bf16.msra.mxu0 0
    %631 = vmatpush.bf16.msra.mxu0 0
    %632 = vmatpush.bf16.msra.mxu0 0
    %633 = vmatpush.bf16.msra.mxu0 0
    %634 = vmatpush.bf16.msra.mxu0 0
    %635 = vmatpush.bf16.msra.mxu0 0
    %636 = vmatpush.bf16.msra.mxu0 0
    %637 = vmatpush.bf16.msra.mxu0 %v203
    %638 = vmatmul.bf16.gmra.mxu0 %v628
    %v639 = vpop.f32.mrf.mxu0
    %v640 = vadd.f32 0.0, %v639
    %v641 = vpop.f32.mrf.mxu0
    %642 = vdwg.mxu0
    %643 = vmatpush.bf16.msra.mxu0 0
    %644 = vmatpush.bf16.msra.mxu0 0
    %645 = vmatpush.bf16.msra.mxu0 0
    %646 = vmatpush.bf16.msra.mxu0 0
    %647 = vmatpush.bf16.msra.mxu0 0
    %648 = vmatpush.bf16.msra.mxu0 0
    %649 = vmatpush.bf16.msra.mxu0 0
    %650 = vmatpush.bf16.msra.mxu0 %v204
    %651 = vmatmul.bf16.gmra.mxu0 %v628
    %v652 = vpop.f32.mrf.mxu0
    %v653 = vadd.f32 0.0, %v652
    %v654 = vpop.f32.mrf.mxu0
    %655 = vdwg.mxu0
    %v656 = vrot.slane %v239, 6
    %v657 = vrot.slane %v240, 5
    %v658 = vsel %vm194, %v657, %v656
    %v659 = vpack.c.b16 %v658, %v658
    %v661 = vsel %vm207, %v659, 0
    %663 = vmatpush.bf16.msra.mxu0 0
    %664 = vmatpush.bf16.msra.mxu0 0
    %665 = vmatpush.bf16.msra.mxu0 0
    %666 = vmatpush.bf16.msra.mxu0 0
    %667 = vmatpush.bf16.msra.mxu0 0
    %668 = vmatpush.bf16.msra.mxu0 0
    %669 = vmatpush.bf16.msra.mxu0 0
    %670 = vmatpush.bf16.msra.mxu0 %v250
    %671 = vmatmul.bf16.gmra.mxu0 %v661
    %v672 = vpop.f32.mrf.mxu0
    %v673 = vadd.f32 %v640, %v672
    %v674 = vpop.f32.mrf.mxu0
    %675 = vdwg.mxu0
    %676 = vmatpush.bf16.msra.mxu0 0
    %677 = vmatpush.bf16.msra.mxu0 0
    %678 = vmatpush.bf16.msra.mxu0 0
    %679 = vmatpush.bf16.msra.mxu0 0
    %680 = vmatpush.bf16.msra.mxu0 0
    %681 = vmatpush.bf16.msra.mxu0 0
    %682 = vmatpush.bf16.msra.mxu0 0
    %683 = vmatpush.bf16.msra.mxu0 %v251
    %684 = vmatmul.bf16.gmra.mxu0 %v661
    %v685 = vpop.f32.mrf.mxu0
    %v686 = vadd.f32 %v653, %v685
    %v687 = vpop.f32.mrf.mxu0
    %688 = vdwg.mxu0
    %v689 = vadd.f32 %v673, %v173
    %v690 = vadd.f32 %v686, %v174
    %v691 = vrot.slane %v191, 7
    %v692 = vrot.slane %v192, 6
    %v693 = vsel %vm194, %v692, %v691
    %v694 = vpack.c.b16 %v693, %v693
    %v696 = vsel %vm207, %v694, 0
    %698 = vmatpush.bf16.msra.mxu0 0
    %699 = vmatpush.bf16.msra.mxu0 0
    %700 = vmatpush.bf16.msra.mxu0 0
    %701 = vmatpush.bf16.msra.mxu0 0
    %702 = vmatpush.bf16.msra.mxu0 0
    %703 = vmatpush.bf16.msra.mxu0 0
    %704 = vmatpush.bf16.msra.mxu0 0
    %705 = vmatpush.bf16.msra.mxu0 %v203
    %706 = vmatmul.bf16.gmra.mxu0 %v696
    %v707 = vpop.f32.mrf.mxu0
    %v708 = vadd.f32 0.0, %v707
    %v709 = vpop.f32.mrf.mxu0
    %710 = vdwg.mxu0
    %711 = vmatpush.bf16.msra.mxu0 0
    %712 = vmatpush.bf16.msra.mxu0 0
    %713 = vmatpush.bf16.msra.mxu0 0
    %714 = vmatpush.bf16.msra.mxu0 0
    %715 = vmatpush.bf16.msra.mxu0 0
    %716 = vmatpush.bf16.msra.mxu0 0
    %717 = vmatpush.bf16.msra.mxu0 0
    %718 = vmatpush.bf16.msra.mxu0 %v204
    %719 = vmatmul.bf16.gmra.mxu0 %v696
    %v720 = vpop.f32.mrf.mxu0
    %v721 = vadd.f32 0.0, %v720
    %v722 = vpop.f32.mrf.mxu0
    %723 = vdwg.mxu0
    %v724 = vrot.slane %v239, 7
    %v725 = vrot.slane %v240, 6
    %v726 = vsel %vm194, %v725, %v724
    %v727 = vpack.c.b16 %v726, %v726
    %v729 = vsel %vm207, %v727, 0
    %731 = vmatpush.bf16.msra.mxu0 0
    %732 = vmatpush.bf16.msra.mxu0 0
    %733 = vmatpush.bf16.msra.mxu0 0
    %734 = vmatpush.bf16.msra.mxu0 0
    %735 = vmatpush.bf16.msra.mxu0 0
    %736 = vmatpush.bf16.msra.mxu0 0
    %737 = vmatpush.bf16.msra.mxu0 0
    %738 = vmatpush.bf16.msra.mxu0 %v250
    %739 = vmatmul.bf16.gmra.mxu0 %v729
    %v740 = vpop.f32.mrf.mxu0
    %v741 = vadd.f32 %v708, %v740
    %v742 = vpop.f32.mrf.mxu0
    %743 = vdwg.mxu0
    %744 = vmatpush.bf16.msra.mxu0 0
    %745 = vmatpush.bf16.msra.mxu0 0
    %746 = vmatpush.bf16.msra.mxu0 0
    %747 = vmatpush.bf16.msra.mxu0 0
    %748 = vmatpush.bf16.msra.mxu0 0
    %749 = vmatpush.bf16.msra.mxu0 0
    %750 = vmatpush.bf16.msra.mxu0 0
    %751 = vmatpush.bf16.msra.mxu0 %v251
    %752 = vmatmul.bf16.gmra.mxu0 %v729
    %v753 = vpop.f32.mrf.mxu0
    %v754 = vadd.f32 %v721, %v753
    %v755 = vpop.f32.mrf.mxu0
    %756 = vdwg.mxu0
    %v757 = vadd.f32 %v741, %v173
    %v758 = vadd.f32 %v754, %v174
    %v759 = vxor.u32 %v283, 2147483648
    %v760 = vxor.u32 %v284, 2147483648
    %v761 = vmul.f32 %v759, 1.442695
    %v762 = vpow.pop %v761
    %v763 = vmul.f32 %v760, 1.442695
    %v764 = vpow.pop %v763
    %v765 = vadd.f32 %v762, 1.0
    %v766 = vadd.f32 %v764, 1.0
    %v767 = vrcp.pop %v765
    %v768 = vmul.f32 %v765, %v767
    %v769 = vsub.f32 1.0, %v768
    %v770 = vmul.f32 %v767, %v769
    %v771 = vadd.f32 %v767, %v770
    %vm772 = vweird.f32 %v765
    %vm773 = vweird.f32 %v767
    %vm774 = vmor %vm772, %vm773
    %v775 = vsel %vm774, %v767, %v771
    %v776 = vand.u32 2147483647, %v765
    %vm777 = vcmp.eq.f32.partialorder %v776, 8.507059e+37
    %v778 = vand.u32 %v765, 2147483648
    %v779 = vor.u32 1.1754944e-38, %v778
    %v780 = vsel %vm777, %v779, %v775
    %v781 = vmul.f32 1.0, %v780
    %v782 = vrcp.pop %v766
    %v783 = vmul.f32 %v766, %v782
    %v784 = vsub.f32 1.0, %v783
    %v785 = vmul.f32 %v782, %v784
    %v786 = vadd.f32 %v782, %v785
    %vm787 = vweird.f32 %v766
    %vm788 = vweird.f32 %v782
    %vm789 = vmor %vm787, %vm788
    %v790 = vsel %vm789, %v782, %v786
    %v791 = vand.u32 2147483647, %v766
    %vm792 = vcmp.eq.f32.partialorder %v791, 8.507059e+37
    %v793 = vand.u32 %v766, 2147483648
    %v794 = vor.u32 1.1754944e-38, %v793
    %v795 = vsel %vm792, %v794, %v790
    %v796 = vmul.f32 1.0, %v795
    %v797 = vtanh.pop %v284
    %v798 = vmul.f32 %v781, 0.0
    %800 = vrot.lane.b32.xlu0 %v797, 64
    %v801 = vpop.permute.xlu0 %800
    %v803 = vmul.f32 %v781, %v801
    %805 = vrot.lane.b32.xlu0 %v803, 64
    %v806 = vpop.permute.xlu0 %805
    %v808 = vadd.f32 %v798, %v806
    %v809 = vtanh.pop %v808
    %811 = vrot.lane.b32.xlu0 %v809, 64
    %v812 = vpop.permute.xlu0 %811
    %v814 = vmul.f32 %v796, %v812
    %v815 = vpack.c.bf16 %v814, %v814
    %v824 = vunpack.c.l.b16 %v149
    %v825 = vunpack.c.h.b16 %v149
    %v826 = vunpack.c.l.b16 %v150
    %v827 = vunpack.c.h.b16 %v150
    %v828 = vunpack.c.l.b16 %v151
    %v829 = vunpack.c.h.b16 %v151
    %v830 = vunpack.c.l.b16 %v152
    %v831 = vunpack.c.h.b16 %v152
    %v832 = vunpack.c.l.b16 %v153
    %v833 = vunpack.c.h.b16 %v153
    %v834 = vunpack.c.l.b16 %v154
    %v835 = vunpack.c.h.b16 %v154
    %v836 = vunpack.c.l.b16 %v155
    %v837 = vunpack.c.h.b16 %v155
    %v838 = vunpack.c.l.b16 %v156
    %v839 = vunpack.c.h.b16 %v156
    %v840 = vpack.c.b16 %v826, %v824
    %v841 = vpack.c.b16 %v827, %v825
    %v842 = vpack.c.b16 %v830, %v828
    %v843 = vpack.c.b16 %v831, %v829
    %v844 = vpack.c.b16 %v834, %v832
    %v845 = vpack.c.b16 %v835, %v833
    %v846 = vpack.c.b16 %v838, %v836
    %v847 = vpack.c.b16 %v839, %v837
    %vm856 = vcmask 523264
    %v858 = vsel %vm856, %v815, 0
    %860 = vmatpush.bf16.msra.mxu0 0
    %861 = vmatpush.bf16.msra.mxu0 0
    %862 = vmatpush.bf16.msra.mxu0 0
    %863 = vmatpush.bf16.msra.mxu0 0
    %864 = vmatpush.bf16.msra.mxu0 %v846
    %865 = vmatpush.bf16.msra.mxu0 %v844
    %866 = vmatpush.bf16.msra.mxu0 %v842
    %867 = vmatpush.bf16.msra.mxu0 %v840
    %868 = vmatmul.bf16.gmra.mxu0 %v858
    %v869 = vpop.f32.mrf.mxu0
    %v870 = vadd.f32 %v349, %v869
    %v871 = vpop.f32.mrf.mxu0
    %872 = vdwg.mxu0
    %873 = vmatpush.bf16.msra.mxu0 0
    %874 = vmatpush.bf16.msra.mxu0 0
    %875 = vmatpush.bf16.msra.mxu0 0
    %876 = vmatpush.bf16.msra.mxu0 0
    %877 = vmatpush.bf16.msra.mxu0 %v847
    %878 = vmatpush.bf16.msra.mxu0 %v845
    %879 = vmatpush.bf16.msra.mxu0 %v843
    %880 = vmatpush.bf16.msra.mxu0 %v841
    %881 = vmatmul.bf16.gmra.mxu0 %v858
    %v882 = vpop.f32.mrf.mxu0
    %v883 = vadd.f32 %v350, %v882
    %v884 = vpop.f32.mrf.mxu0
    %885 = vdwg.mxu0
    %v886 = vxor.u32 %v870, 2147483648
    %v887 = vxor.u32 %v883, 2147483648
    %v888 = vmul.f32 %v886, 1.442695
    %v889 = vpow.pop %v888
    %v890 = vmul.f32 %v887, 1.442695
    %v891 = vpow.pop %v890
    %v892 = vadd.f32 %v889, 1.0
    %v893 = vadd.f32 %v891, 1.0
    %v894 = vrcp.pop %v892
    %v895 = vmul.f32 %v892, %v894
    %v896 = vsub.f32 1.0, %v895
    %v897 = vmul.f32 %v894, %v896
    %v898 = vadd.f32 %v894, %v897
    %vm899 = vweird.f32 %v892
    %vm900 = vweird.f32 %v894
    %vm901 = vmor %vm899, %vm900
    %v902 = vsel %vm901, %v894, %v898
    %v903 = vand.u32 2147483647, %v892
    %vm904 = vcmp.eq.f32.partialorder %v903, 8.507059e+37
    %v905 = vand.u32 %v892, 2147483648
    %v906 = vor.u32 1.1754944e-38, %v905
    %v907 = vsel %vm904, %v906, %v902
    %v908 = vmul.f32 1.0, %v907
    %v909 = vrcp.pop %v893
    %v910 = vmul.f32 %v893, %v909
    %v911 = vsub.f32 1.0, %v910
    %v912 = vmul.f32 %v909, %v911
    %v913 = vadd.f32 %v909, %v912
    %vm914 = vweird.f32 %v893
    %vm915 = vweird.f32 %v909
    %vm916 = vmor %vm914, %vm915
    %v917 = vsel %vm916, %v909, %v913
    %v918 = vand.u32 2147483647, %v893
    %vm919 = vcmp.eq.f32.partialorder %v918, 8.507059e+37
    %v920 = vand.u32 %v893, 2147483648
    %v921 = vor.u32 1.1754944e-38, %v920
    %v922 = vsel %vm919, %v921, %v917
    %v923 = vmul.f32 1.0, %v922
    %v924 = vtanh.pop %v883
    %v925 = vmul.f32 %v908, %v808
    %927 = vrot.lane.b32.xlu0 %v924, 64
    %v928 = vpop.permute.xlu0 %927
    %v930 = vmul.f32 %v908, %v928
    %932 = vrot.lane.b32.xlu0 %v930, 64
    %v933 = vpop.permute.xlu0 %932
    %v935 = vadd.f32 %v925, %v933
    %v936 = vtanh.pop %v935
    %938 = vrot.lane.b32.xlu0 %v936, 64
    %v939 = vpop.permute.xlu0 %938
    %v941 = vmul.f32 %v923, %v939
    %v942 = vpack.c.bf16 %v941, %v941
    %v944 = vsel %vm856, %v942, 0
    %946 = vmatpush.bf16.msra.mxu0 0
    %947 = vmatpush.bf16.msra.mxu0 0
    %948 = vmatpush.bf16.msra.mxu0 0
    %949 = vmatpush.bf16.msra.mxu0 0
    %950 = vmatpush.bf16.msra.mxu0 %v846
    %951 = vmatpush.bf16.msra.mxu0 %v844
    %952 = vmatpush.bf16.msra.mxu0 %v842
    %953 = vmatpush.bf16.msra.mxu0 %v840
    %954 = vmatmul.bf16.gmra.mxu0 %v944
    %v955 = vpop.f32.mrf.mxu0
    %v956 = vadd.f32 %v417, %v955
    %v957 = vpop.f32.mrf.mxu0
    %958 = vdwg.mxu0
    %959 = vmatpush.bf16.msra.mxu0 0
    %960 = vmatpush.bf16.msra.mxu0 0
    %961 = vmatpush.bf16.msra.mxu0 0
    %962 = vmatpush.bf16.msra.mxu0 0
    %963 = vmatpush.bf16.msra.mxu0 %v847
    %964 = vmatpush.bf16.msra.mxu0 %v845
    %965 = vmatpush.bf16.msra.mxu0 %v843
    %966 = vmatpush.bf16.msra.mxu0 %v841
    %967 = vmatmul.bf16.gmra.mxu0 %v944
    %v968 = vpop.f32.mrf.mxu0
    %v969 = vadd.f32 %v418, %v968
    %v970 = vpop.f32.mrf.mxu0
    %971 = vdwg.mxu0
    %v972 = vxor.u32 %v956, 2147483648
    %v973 = vxor.u32 %v969, 2147483648
    %v974 = vmul.f32 %v972, 1.442695
    %v975 = vpow.pop %v974
    %v976 = vmul.f32 %v973, 1.442695
    %v977 = vpow.pop %v976
    %v978 = vadd.f32 %v975, 1.0
    %v979 = vadd.f32 %v977, 1.0
    %v980 = vrcp.pop %v978
    %v981 = vmul.f32 %v978, %v980
    %v982 = vsub.f32 1.0, %v981
    %v983 = vmul.f32 %v980, %v982
    %v984 = vadd.f32 %v980, %v983
    %vm985 = vweird.f32 %v978
    %vm986 = vweird.f32 %v980
    %vm987 = vmor %vm985, %vm986
    %v988 = vsel %vm987, %v980, %v984
    %v989 = vand.u32 2147483647, %v978
    %vm990 = vcmp.eq.f32.partialorder %v989, 8.507059e+37
    %v991 = vand.u32 %v978, 2147483648
    %v992 = vor.u32 1.1754944e-38, %v991
    %v993 = vsel %vm990, %v992, %v988
    %v994 = vmul.f32 1.0, %v993
    %v995 = vrcp.pop %v979
    %v996 = vmul.f32 %v979, %v995
    %v997 = vsub.f32 1.0, %v996
    %v998 = vmul.f32 %v995, %v997
    %v999 = vadd.f32 %v995, %v998
    %vm1000 = vweird.f32 %v979
    %vm1001 = vweird.f32 %v995
    %vm1002 = vmor %vm1000, %vm1001
    %v1003 = vsel %vm1002, %v995, %v999
    %v1004 = vand.u32 2147483647, %v979
    %vm1005 = vcmp.eq.f32.partialorder %v1004, 8.507059e+37
    %v1006 = vand.u32 %v979, 2147483648
    %v1007 = vor.u32 1.1754944e-38, %v1006
    %v1008 = vsel %vm1005, %v1007, %v1003
    %v1009 = vmul.f32 1.0, %v1008
    %v1010 = vtanh.pop %v969
    %v1011 = vmul.f32 %v994, %v935
    %1013 = vrot.lane.b32.xlu0 %v1010, 64
    %v1014 = vpop.permute.xlu0 %1013
    %v1016 = vmul.f32 %v994, %v1014
    %1018 = vrot.lane.b32.xlu0 %v1016, 64
    %v1019 = vpop.permute.xlu0 %1018
    %v1021 = vadd.f32 %v1011, %v1019
    %v1022 = vtanh.pop %v1021
    %1024 = vrot.lane.b32.xlu0 %v1022, 64
    %v1025 = vpop.permute.xlu0 %1024
    %v1027 = vmul.f32 %v1009, %v1025
    %v1028 = vpack.c.bf16 %v1027, %v1027
    %v1030 = vsel %vm856, %v1028, 0
    %1032 = vmatpush.bf16.msra.mxu0 0
    %1033 = vmatpush.bf16.msra.mxu0 0
    %1034 = vmatpush.bf16.msra.mxu0 0
    %1035 = vmatpush.bf16.msra.mxu0 0
    %1036 = vmatpush.bf16.msra.mxu0 %v846
    %1037 = vmatpush.bf16.msra.mxu0 %v844
    %1038 = vmatpush.bf16.msra.mxu0 %v842
    %1039 = vmatpush.bf16.msra.mxu0 %v840
    %1040 = vmatmul.bf16.gmra.mxu0 %v1030
    %v1041 = vpop.f32.mrf.mxu0
    %v1042 = vadd.f32 %v485, %v1041
    %v1043 = vpop.f32.mrf.mxu0
    %1044 = vdwg.mxu0
    %1045 = vmatpush.bf16.msra.mxu0 0
    %1046 = vmatpush.bf16.msra.mxu0 0
    %1047 = vmatpush.bf16.msra.mxu0 0
    %1048 = vmatpush.bf16.msra.mxu0 0
    %1049 = vmatpush.bf16.msra.mxu0 %v847
    %1050 = vmatpush.bf16.msra.mxu0 %v845
    %1051 = vmatpush.bf16.msra.mxu0 %v843
    %1052 = vmatpush.bf16.msra.mxu0 %v841
    %1053 = vmatmul.bf16.gmra.mxu0 %v1030
    %v1054 = vpop.f32.mrf.mxu0
    %v1055 = vadd.f32 %v486, %v1054
    %v1056 = vpop.f32.mrf.mxu0
    %1057 = vdwg.mxu0
    %v1058 = vxor.u32 %v1042, 2147483648
    %v1059 = vxor.u32 %v1055, 2147483648
    %v1060 = vmul.f32 %v1058, 1.442695
    %v1061 = vpow.pop %v1060
    %v1062 = vmul.f32 %v1059, 1.442695
    %v1063 = vpow.pop %v1062
    %v1064 = vadd.f32 %v1061, 1.0
    %v1065 = vadd.f32 %v1063, 1.0
    %v1066 = vrcp.pop %v1064
    %v1067 = vmul.f32 %v1064, %v1066
    %v1068 = vsub.f32 1.0, %v1067
    %v1069 = vmul.f32 %v1066, %v1068
    %v1070 = vadd.f32 %v1066, %v1069
    %vm1071 = vweird.f32 %v1064
    %vm1072 = vweird.f32 %v1066
    %vm1073 = vmor %vm1071, %vm1072
    %v1074 = vsel %vm1073, %v1066, %v1070
    %v1075 = vand.u32 2147483647, %v1064
    %vm1076 = vcmp.eq.f32.partialorder %v1075, 8.507059e+37
    %v1077 = vand.u32 %v1064, 2147483648
    %v1078 = vor.u32 1.1754944e-38, %v1077
    %v1079 = vsel %vm1076, %v1078, %v1074
    %v1080 = vmul.f32 1.0, %v1079
    %v1081 = vrcp.pop %v1065
    %v1082 = vmul.f32 %v1065, %v1081
    %v1083 = vsub.f32 1.0, %v1082
    %v1084 = vmul.f32 %v1081, %v1083
    %v1085 = vadd.f32 %v1081, %v1084
    %vm1086 = vweird.f32 %v1065
    %vm1087 = vweird.f32 %v1081
    %vm1088 = vmor %vm1086, %vm1087
    %v1089 = vsel %vm1088, %v1081, %v1085
    %v1090 = vand.u32 2147483647, %v1065
    %vm1091 = vcmp.eq.f32.partialorder %v1090, 8.507059e+37
    %v1092 = vand.u32 %v1065, 2147483648
    %v1093 = vor.u32 1.1754944e-38, %v1092
    %v1094 = vsel %vm1091, %v1093, %v1089
    %v1095 = vmul.f32 1.0, %v1094
    %v1096 = vtanh.pop %v1055
    %v1097 = vmul.f32 %v1080, %v1021
    %1099 = vrot.lane.b32.xlu0 %v1096, 64
    %v1100 = vpop.permute.xlu0 %1099
    %v1102 = vmul.f32 %v1080, %v1100
    %1104 = vrot.lane.b32.xlu0 %v1102, 64
    %v1105 = vpop.permute.xlu0 %1104
    %v1107 = vadd.f32 %v1097, %v1105
    %v1108 = vtanh.pop %v1107
    %1110 = vrot.lane.b32.xlu0 %v1108, 64
    %v1111 = vpop.permute.xlu0 %1110
    %v1113 = vmul.f32 %v1095, %v1111
    %v1114 = vpack.c.bf16 %v1113, %v1113
    %v1116 = vsel %vm856, %v1114, 0
    %1118 = vmatpush.bf16.msra.mxu0 0
    %1119 = vmatpush.bf16.msra.mxu0 0
    %1120 = vmatpush.bf16.msra.mxu0 0
    %1121 = vmatpush.bf16.msra.mxu0 0
    %1122 = vmatpush.bf16.msra.mxu0 %v846
    %1123 = vmatpush.bf16.msra.mxu0 %v844
    %1124 = vmatpush.bf16.msra.mxu0 %v842
    %1125 = vmatpush.bf16.msra.mxu0 %v840
    %1126 = vmatmul.bf16.gmra.mxu0 %v1116
    %v1127 = vpop.f32.mrf.mxu0
    %v1128 = vadd.f32 %v553, %v1127
    %v1129 = vpop.f32.mrf.mxu0
    %1130 = vdwg.mxu0
    %1131 = vmatpush.bf16.msra.mxu0 0
    %1132 = vmatpush.bf16.msra.mxu0 0
    %1133 = vmatpush.bf16.msra.mxu0 0
    %1134 = vmatpush.bf16.msra.mxu0 0
    %1135 = vmatpush.bf16.msra.mxu0 %v847
    %1136 = vmatpush.bf16.msra.mxu0 %v845
    %1137 = vmatpush.bf16.msra.mxu0 %v843
    %1138 = vmatpush.bf16.msra.mxu0 %v841
    %1139 = vmatmul.bf16.gmra.mxu0 %v1116
    %v1140 = vpop.f32.mrf.mxu0
    %v1141 = vadd.f32 %v554, %v1140
    %v1142 = vpop.f32.mrf.mxu0
    %1143 = vdwg.mxu0
    %v1144 = vxor.u32 %v1128, 2147483648
    %v1145 = vxor.u32 %v1141, 2147483648
    %v1146 = vmul.f32 %v1144, 1.442695
    %v1147 = vpow.pop %v1146
    %v1148 = vmul.f32 %v1145, 1.442695
    %v1149 = vpow.pop %v1148
    %v1150 = vadd.f32 %v1147, 1.0
    %v1151 = vadd.f32 %v1149, 1.0
    %v1152 = vrcp.pop %v1150
    %v1153 = vmul.f32 %v1150, %v1152
    %v1154 = vsub.f32 1.0, %v1153
    %v1155 = vmul.f32 %v1152, %v1154
    %v1156 = vadd.f32 %v1152, %v1155
    %vm1157 = vweird.f32 %v1150
    %vm1158 = vweird.f32 %v1152
    %vm1159 = vmor %vm1157, %vm1158
    %v1160 = vsel %vm1159, %v1152, %v1156
    %v1161 = vand.u32 2147483647, %v1150
    %vm1162 = vcmp.eq.f32.partialorder %v1161, 8.507059e+37
    %v1163 = vand.u32 %v1150, 2147483648
    %v1164 = vor.u32 1.1754944e-38, %v1163
    %v1165 = vsel %vm1162, %v1164, %v1160
    %v1166 = vmul.f32 1.0, %v1165
    %v1167 = vrcp.pop %v1151
    %v1168 = vmul.f32 %v1151, %v1167
    %v1169 = vsub.f32 1.0, %v1168
    %v1170 = vmul.f32 %v1167, %v1169
    %v1171 = vadd.f32 %v1167, %v1170
    %vm1172 = vweird.f32 %v1151
    %vm1173 = vweird.f32 %v1167
    %vm1174 = vmor %vm1172, %vm1173
    %v1175 = vsel %vm1174, %v1167, %v1171
    %v1176 = vand.u32 2147483647, %v1151
    %vm1177 = vcmp.eq.f32.partialorder %v1176, 8.507059e+37
    %v1178 = vand.u32 %v1151, 2147483648
    %v1179 = vor.u32 1.1754944e-38, %v1178
    %v1180 = vsel %vm1177, %v1179, %v1175
    %v1181 = vmul.f32 1.0, %v1180
    %v1182 = vtanh.pop %v1141
    %v1183 = vmul.f32 %v1166, %v1107
    %1185 = vrot.lane.b32.xlu0 %v1182, 64
    %v1186 = vpop.permute.xlu0 %1185
    %v1188 = vmul.f32 %v1166, %v1186
    %1190 = vrot.lane.b32.xlu0 %v1188, 64
    %v1191 = vpop.permute.xlu0 %1190
    %v1193 = vadd.f32 %v1183, %v1191
    %v1194 = vtanh.pop %v1193
    %1196 = vrot.lane.b32.xlu0 %v1194, 64
    %v1197 = vpop.permute.xlu0 %1196
    %v1199 = vmul.f32 %v1181, %v1197
    %v1200 = vpack.c.bf16 %v1199, %v1199
    %v1202 = vsel %vm856, %v1200, 0
    %1204 = vmatpush.bf16.msra.mxu0 0
    %1205 = vmatpush.bf16.msra.mxu0 0
    %1206 = vmatpush.bf16.msra.mxu0 0
    %1207 = vmatpush.bf16.msra.mxu0 0
    %1208 = vmatpush.bf16.msra.mxu0 %v846
    %1209 = vmatpush.bf16.msra.mxu0 %v844
    %1210 = vmatpush.bf16.msra.mxu0 %v842
    %1211 = vmatpush.bf16.msra.mxu0 %v840
    %1212 = vmatmul.bf16.gmra.mxu0 %v1202
    %v1213 = vpop.f32.mrf.mxu0
    %v1214 = vadd.f32 %v621, %v1213
    %v1215 = vpop.f32.mrf.mxu0
    %1216 = vdwg.mxu0
    %1217 = vmatpush.bf16.msra.mxu0 0
    %1218 = vmatpush.bf16.msra.mxu0 0
    %1219 = vmatpush.bf16.msra.mxu0 0
    %1220 = vmatpush.bf16.msra.mxu0 0
    %1221 = vmatpush.bf16.msra.mxu0 %v847
    %1222 = vmatpush.bf16.msra.mxu0 %v845
    %1223 = vmatpush.bf16.msra.mxu0 %v843
    %1224 = vmatpush.bf16.msra.mxu0 %v841
    %1225 = vmatmul.bf16.gmra.mxu0 %v1202
    %v1226 = vpop.f32.mrf.mxu0
    %v1227 = vadd.f32 %v622, %v1226
    %v1228 = vpop.f32.mrf.mxu0
    %1229 = vdwg.mxu0
    %v1230 = vxor.u32 %v1214, 2147483648
    %v1231 = vxor.u32 %v1227, 2147483648
    %v1232 = vmul.f32 %v1230, 1.442695
    %v1233 = vpow.pop %v1232
    %v1234 = vmul.f32 %v1231, 1.442695
    %v1235 = vpow.pop %v1234
    %v1236 = vadd.f32 %v1233, 1.0
    %v1237 = vadd.f32 %v1235, 1.0
    %v1238 = vrcp.pop %v1236
    %v1239 = vmul.f32 %v1236, %v1238
    %v1240 = vsub.f32 1.0, %v1239
    %v1241 = vmul.f32 %v1238, %v1240
    %v1242 = vadd.f32 %v1238, %v1241
    %vm1243 = vweird.f32 %v1236
    %vm1244 = vweird.f32 %v1238
    %vm1245 = vmor %vm1243, %vm1244
    %v1246 = vsel %vm1245, %v1238, %v1242
    %v1247 = vand.u32 2147483647, %v1236
    %vm1248 = vcmp.eq.f32.partialorder %v1247, 8.507059e+37
    %v1249 = vand.u32 %v1236, 2147483648
    %v1250 = vor.u32 1.1754944e-38, %v1249
    %v1251 = vsel %vm1248, %v1250, %v1246
    %v1252 = vmul.f32 1.0, %v1251
    %v1253 = vrcp.pop %v1237
    %v1254 = vmul.f32 %v1237, %v1253
    %v1255 = vsub.f32 1.0, %v1254
    %v1256 = vmul.f32 %v1253, %v1255
    %v1257 = vadd.f32 %v1253, %v1256
    %vm1258 = vweird.f32 %v1237
    %vm1259 = vweird.f32 %v1253
    %vm1260 = vmor %vm1258, %vm1259
    %v1261 = vsel %vm1260, %v1253, %v1257
    %v1262 = vand.u32 2147483647, %v1237
    %vm1263 = vcmp.eq.f32.partialorder %v1262, 8.507059e+37
    %v1264 = vand.u32 %v1237, 2147483648
    %v1265 = vor.u32 1.1754944e-38, %v1264
    %v1266 = vsel %vm1263, %v1265, %v1261
    %v1267 = vmul.f32 1.0, %v1266
    %v1268 = vtanh.pop %v1227
    %v1269 = vmul.f32 %v1252, %v1193
    %1271 = vrot.lane.b32.xlu0 %v1268, 64
    %v1272 = vpop.permute.xlu0 %1271
    %v1274 = vmul.f32 %v1252, %v1272
    %1276 = vrot.lane.b32.xlu0 %v1274, 64
    %v1277 = vpop.permute.xlu0 %1276
    %v1279 = vadd.f32 %v1269, %v1277
    %v1280 = vtanh.pop %v1279
    %1282 = vrot.lane.b32.xlu0 %v1280, 64
    %v1283 = vpop.permute.xlu0 %1282
    %v1285 = vmul.f32 %v1267, %v1283
    %v1286 = vpack.c.bf16 %v1285, %v1285
    %v1288 = vsel %vm856, %v1286, 0
    %1290 = vmatpush.bf16.msra.mxu0 0
    %1291 = vmatpush.bf16.msra.mxu0 0
    %1292 = vmatpush.bf16.msra.mxu0 0
    %1293 = vmatpush.bf16.msra.mxu0 0
    %1294 = vmatpush.bf16.msra.mxu0 %v846
    %1295 = vmatpush.bf16.msra.mxu0 %v844
    %1296 = vmatpush.bf16.msra.mxu0 %v842
    %1297 = vmatpush.bf16.msra.mxu0 %v840
    %1298 = vmatmul.bf16.gmra.mxu0 %v1288
    %v1299 = vpop.f32.mrf.mxu0
    %v1300 = vadd.f32 %v689, %v1299
    %v1301 = vpop.f32.mrf.mxu0
    %1302 = vdwg.mxu0
    %1303 = vmatpush.bf16.msra.mxu0 0
    %1304 = vmatpush.bf16.msra.mxu0 0
    %1305 = vmatpush.bf16.msra.mxu0 0
    %1306 = vmatpush.bf16.msra.mxu0 0
    %1307 = vmatpush.bf16.msra.mxu0 %v847
    %1308 = vmatpush.bf16.msra.mxu0 %v845
    %1309 = vmatpush.bf16.msra.mxu0 %v843
    %1310 = vmatpush.bf16.msra.mxu0 %v841
    %1311 = vmatmul.bf16.gmra.mxu0 %v1288
    %v1312 = vpop.f32.mrf.mxu0
    %v1313 = vadd.f32 %v690, %v1312
    %v1314 = vpop.f32.mrf.mxu0
    %1315 = vdwg.mxu0
    %v1316 = vxor.u32 %v1300, 2147483648
    %v1317 = vxor.u32 %v1313, 2147483648
    %v1318 = vmul.f32 %v1316, 1.442695
    %v1319 = vpow.pop %v1318
    %v1320 = vmul.f32 %v1317, 1.442695
    %v1321 = vpow.pop %v1320
    %v1322 = vadd.f32 %v1319, 1.0
    %v1323 = vadd.f32 %v1321, 1.0
    %v1324 = vrcp.pop %v1322
    %v1325 = vmul.f32 %v1322, %v1324
    %v1326 = vsub.f32 1.0, %v1325
    %v1327 = vmul.f32 %v1324, %v1326
    %v1328 = vadd.f32 %v1324, %v1327
    %vm1329 = vweird.f32 %v1322
    %vm1330 = vweird.f32 %v1324
    %vm1331 = vmor %vm1329, %vm1330
    %v1332 = vsel %vm1331, %v1324, %v1328
    %v1333 = vand.u32 2147483647, %v1322
    %vm1334 = vcmp.eq.f32.partialorder %v1333, 8.507059e+37
    %v1335 = vand.u32 %v1322, 2147483648
    %v1336 = vor.u32 1.1754944e-38, %v1335
    %v1337 = vsel %vm1334, %v1336, %v1332
    %v1338 = vmul.f32 1.0, %v1337
    %v1339 = vrcp.pop %v1323
    %v1340 = vmul.f32 %v1323, %v1339
    %v1341 = vsub.f32 1.0, %v1340
    %v1342 = vmul.f32 %v1339, %v1341
    %v1343 = vadd.f32 %v1339, %v1342
    %vm1344 = vweird.f32 %v1323
    %vm1345 = vweird.f32 %v1339
    %vm1346 = vmor %vm1344, %vm1345
    %v1347 = vsel %vm1346, %v1339, %v1343
    %v1348 = vand.u32 2147483647, %v1323
    %vm1349 = vcmp.eq.f32.partialorder %v1348, 8.507059e+37
    %v1350 = vand.u32 %v1323, 2147483648
    %v1351 = vor.u32 1.1754944e-38, %v1350
    %v1352 = vsel %vm1349, %v1351, %v1347
    %v1353 = vmul.f32 1.0, %v1352
    %v1354 = vtanh.pop %v1313
    %v1355 = vmul.f32 %v1338, %v1279
    %1357 = vrot.lane.b32.xlu0 %v1354, 64
    %v1358 = vpop.permute.xlu0 %1357
    %v1360 = vmul.f32 %v1338, %v1358
    %1362 = vrot.lane.b32.xlu0 %v1360, 64
    %v1363 = vpop.permute.xlu0 %1362
    %v1365 = vadd.f32 %v1355, %v1363
    %v1366 = vtanh.pop %v1365
    %1368 = vrot.lane.b32.xlu0 %v1366, 64
    %v1369 = vpop.permute.xlu0 %1368
    %v1371 = vmul.f32 %v1353, %v1369
    %v1372 = vpack.c.bf16 %v1371, %v1371
    %v1374 = vsel %vm856, %v1372, 0
    %1376 = vmatpush.bf16.msra.mxu0 0
    %1377 = vmatpush.bf16.msra.mxu0 0
    %1378 = vmatpush.bf16.msra.mxu0 0
    %1379 = vmatpush.bf16.msra.mxu0 0
    %1380 = vmatpush.bf16.msra.mxu0 %v846
    %1381 = vmatpush.bf16.msra.mxu0 %v844
    %1382 = vmatpush.bf16.msra.mxu0 %v842
    %1383 = vmatpush.bf16.msra.mxu0 %v840
    %1384 = vmatmul.bf16.gmra.mxu0 %v1374
    %v1385 = vpop.f32.mrf.mxu0
    %v1386 = vadd.f32 %v757, %v1385
    %v1387 = vpop.f32.mrf.mxu0
    %1388 = vdwg.mxu0
    %1389 = vmatpush.bf16.msra.mxu0 0
    %1390 = vmatpush.bf16.msra.mxu0 0
    %1391 = vmatpush.bf16.msra.mxu0 0
    %1392 = vmatpush.bf16.msra.mxu0 0
    %1393 = vmatpush.bf16.msra.mxu0 %v847
    %1394 = vmatpush.bf16.msra.mxu0 %v845
    %1395 = vmatpush.bf16.msra.mxu0 %v843
    %1396 = vmatpush.bf16.msra.mxu0 %v841
    %1397 = vmatmul.bf16.gmra.mxu0 %v1374
    %v1398 = vpop.f32.mrf.mxu0
    %v1399 = vadd.f32 %v758, %v1398
    %v1400 = vpop.f32.mrf.mxu0
    %1401 = vdwg.mxu0
    %v1402 = vxor.u32 %v1386, 2147483648
    %v1403 = vxor.u32 %v1399, 2147483648
    %v1404 = vmul.f32 %v1402, 1.442695
    %v1405 = vpow.pop %v1404
    %v1406 = vmul.f32 %v1403, 1.442695
    %v1407 = vpow.pop %v1406
    %v1408 = vadd.f32 %v1405, 1.0
    %v1409 = vadd.f32 %v1407, 1.0
    %v1410 = vrcp.pop %v1408
    %v1411 = vmul.f32 %v1408, %v1410
    %v1412 = vsub.f32 1.0, %v1411
    %v1413 = vmul.f32 %v1410, %v1412
    %v1414 = vadd.f32 %v1410, %v1413
    %vm1415 = vweird.f32 %v1408
    %vm1416 = vweird.f32 %v1410
    %vm1417 = vmor %vm1415, %vm1416
    %v1418 = vsel %vm1417, %v1410, %v1414
    %v1419 = vand.u32 2147483647, %v1408
    %vm1420 = vcmp.eq.f32.partialorder %v1419, 8.507059e+37
    %v1421 = vand.u32 %v1408, 2147483648
    %v1422 = vor.u32 1.1754944e-38, %v1421
    %v1423 = vsel %vm1420, %v1422, %v1418
    %v1424 = vmul.f32 1.0, %v1423
    %v1425 = vrcp.pop %v1409
    %v1426 = vmul.f32 %v1409, %v1425
    %v1427 = vsub.f32 1.0, %v1426
    %v1428 = vmul.f32 %v1425, %v1427
    %v1429 = vadd.f32 %v1425, %v1428
    %vm1430 = vweird.f32 %v1409
    %vm1431 = vweird.f32 %v1425
    %vm1432 = vmor %vm1430, %vm1431
    %v1433 = vsel %vm1432, %v1425, %v1429
    %v1434 = vand.u32 2147483647, %v1409
    %vm1435 = vcmp.eq.f32.partialorder %v1434, 8.507059e+37
    %v1436 = vand.u32 %v1409, 2147483648
    %v1437 = vor.u32 1.1754944e-38, %v1436
    %v1438 = vsel %vm1435, %v1437, %v1433
    %v1439 = vmul.f32 1.0, %v1438
    %v1440 = vtanh.pop %v1399
    %v1441 = vmul.f32 %v1424, %v1365
    %1443 = vrot.lane.b32.xlu0 %v1440, 64
    %v1444 = vpop.permute.xlu0 %1443
    %v1446 = vmul.f32 %v1424, %v1444
    %1448 = vrot.lane.b32.xlu0 %v1446, 64
    %v1449 = vpop.permute.xlu0 %1448
    %v1451 = vadd.f32 %v1441, %v1449
    %v1452 = vtanh.pop %v1451
    %1454 = vrot.lane.b32.xlu0 %v1452, 64
    %v1455 = vpop.permute.xlu0 %1454
    %v1457 = vmul.f32 %v1439, %v1455
    %1459 = vrot.lane.b32.xlu0 %v1457, 96
    %v1460 = vpop.permute.xlu0 %1459
    %v1462 = vadd.f32 %v1457, %v1460
    %1464 = vrot.lane.b32.xlu0 %v1451, 96
    %v1465 = vpop.permute.xlu0 %1464
    %v1467 = vadd.f32 %v1451, %v1465
    %v1468 = vpack.c.bf16 %v1462, %v1462
    %v1473 = vunpack.c.l.b16 %v159
    %v1474 = vunpack.c.l.b16 %v160
    %v1475 = vunpack.c.l.b16 %v161
    %v1476 = vunpack.c.l.b16 %v162
    %v1477 = vpack.c.b16 %v1474, %v1473
    %v1478 = vpack.c.b16 %v1476, %v1475
    %vm1481 = vcmask 261120
    %v1483 = vsel %vm1481, %v1468, 0
    %1485 = vmatpush.bf16.msra.mxu0 0
    %1486 = vmatpush.bf16.msra.mxu0 0
    %1487 = vmatpush.bf16.msra.mxu0 0
    %1488 = vmatpush.bf16.msra.mxu0 0
    %1489 = vmatpush.bf16.msra.mxu0 0
    %1490 = vmatpush.bf16.msra.mxu0 0
    %1491 = vmatpush.bf16.msra.mxu0 %v1478
    %1492 = vmatpush.bf16.msra.mxu0 %v1477
    %1493 = vmatmul.bf16.gmra.mxu0 %v1483
    %v1494 = vpop.f32.mrf.mxu0
    %v1495 = vadd.f32 0.0, %v1494
    %v1496 = vpop.f32.mrf.mxu0
    %1497 = vdwg.mxu0
    %v1500 = vunpack.c.l.b16 %v157
    %v1501 = vunpack.c.l.b16 %v158
    %v1502 = vpack.c.b16 %v1501, %v1500
    %1504 = vmatpush.bf16.msra.mxu0 0
    %1505 = vmatpush.bf16.msra.mxu0 0
    %1506 = vmatpush.bf16.msra.mxu0 0
    %1507 = vmatpush.bf16.msra.mxu0 0
    %1508 = vmatpush.bf16.msra.mxu0 0
    %1509 = vmatpush.bf16.msra.mxu0 0
    %1510 = vmatpush.bf16.msra.mxu0 0
    %1511 = vmatpush.bf16.msra.mxu0 %v1502
    %1512 = vmatmul.bf16.gmra.mxu0 %v696
    %v1513 = vpop.f32.mrf.mxu0
    %v1514 = vadd.f32 %v1495, %v1513
    %v1515 = vpop.f32.mrf.mxu0
    %1516 = vdwg.mxu0
    %v1517 = vadd.f32 %v1514, %v179
    %v1518 = vxor.u32 %v1517, 2147483648
    %v1519 = vmul.f32 %v1518, 1.442695
    %v1520 = vpow.pop %v1519
    %v1521 = vadd.f32 %v1520, 1.0
    %v1522 = vrcp.pop %v1521
    %v1523 = vmul.f32 %v1521, %v1522
    %v1524 = vsub.f32 1.0, %v1523
    %v1525 = vmul.f32 %v1522, %v1524
    %v1526 = vadd.f32 %v1522, %v1525
    %vm1527 = vweird.f32 %v1521
    %vm1528 = vweird.f32 %v1522
    %vm1529 = vmor %vm1527, %vm1528
    %v1530 = vsel %vm1529, %v1522, %v1526
    %v1531 = vand.u32 2147483647, %v1521
    %vm1532 = vcmp.eq.f32.partialorder %v1531, 8.507059e+37
    %v1533 = vand.u32 %v1521, 2147483648
    %v1534 = vor.u32 1.1754944e-38, %v1533
    %v1535 = vsel %vm1532, %v1534, %v1530
    %v1536 = vmul.f32 1.0, %v1535
    %v1537 = vtanh.pop %v1517
    %1539 = vrot.lane.b32.xlu0 %v1467, 96
    %v1540 = vpop.permute.xlu0 %1539
    %v1542 = vmul.f32 %v1536, %v1540
    %1544 = vrot.lane.b32.xlu0 %v1537, 32
    %v1545 = vpop.permute.xlu0 %1544
    %v1547 = vmul.f32 %v1536, %v1545
    %1549 = vrot.lane.b32.xlu0 %v1547, 32
    %v1550 = vpop.permute.xlu0 %1549
    %v1552 = vadd.f32 %v1542, %v1550
    %v1553 = vtanh.pop %v1552
    %1555 = vrot.lane.b32.xlu0 %v1553, 32
    %v1556 = vpop.permute.xlu0 %1555
    %v1558 = vmul.f32 %v1536, %v1556
    %v1559 = vpack.c.bf16 %v1558, %v1558
    %1561 = vrot.lane.b32.xlu0 %v1559, 64
    %v1562 = vpop.permute.xlu0 %1561
    %v1567 = vunpack.c.l.b16 %v163
    %v1568 = vunpack.c.l.b16 %v164
    %v1569 = vunpack.c.l.b16 %v165
    %v1570 = vunpack.c.l.b16 %v166
    %v1571 = vpack.c.b16 %v1568, %v1567
    %v1572 = vpack.c.b16 %v1570, %v1569
    %v1576 = vsel %vm1481, %v1562, 0
    %1578 = vmatpush.bf16.msra.mxu0 0
    %1579 = vmatpush.bf16.msra.mxu0 0
    %1580 = vmatpush.bf16.msra.mxu0 0
    %1581 = vmatpush.bf16.msra.mxu0 0
    %1582 = vmatpush.bf16.msra.mxu0 0
    %1583 = vmatpush.bf16.msra.mxu0 0
    %1584 = vmatpush.bf16.msra.mxu0 %v1572
    %1585 = vmatpush.bf16.msra.mxu0 %v1571
    %1586 = vmatmul.bf16.gmra.mxu0 %v1576
    %v1587 = vpop.f32.mrf.mxu0
    %v1588 = vadd.f32 %v183, %v1587
    %v1589 = vpop.f32.mrf.mxu0
    %1590 = vdwg.mxu0
    %v1591 = vmax.f32 %v1588, -1.0
    %v1592 = vmin.f32 %v1591, 1.0
    %v1593 = vpack.c.bf16 %v1592, %v1592
    %1594 = vmatpush.bf16.msra.mxu0 0
    %1595 = vmatpush.bf16.msra.mxu0 0
    %1596 = vmatpush.bf16.msra.mxu0 0
    %1597 = vmatpush.bf16.msra.mxu0 0
    %1598 = vmatpush.bf16.msra.mxu0 0
    %1599 = vmatpush.bf16.msra.mxu0 0
    %1600 = vmatpush.bf16.msra.mxu0 %v1478
    %1601 = vmatpush.bf16.msra.mxu0 %v1477
    %1602 = vmatmul.bf16.gmra.mxu0 %v1576
    %v1603 = vpop.f32.mrf.mxu0
    %v1604 = vadd.f32 0.0, %v1603
    %v1605 = vpop.f32.mrf.mxu0
    %1606 = vdwg.mxu0
    %v1608 = vsel %vm207, %v1593, 0
    %1610 = vmatpush.bf16.msra.mxu0 0
    %1611 = vmatpush.bf16.msra.mxu0 0
    %1612 = vmatpush.bf16.msra.mxu0 0
    %1613 = vmatpush.bf16.msra.mxu0 0
    %1614 = vmatpush.bf16.msra.mxu0 0
    %1615 = vmatpush.bf16.msra.mxu0 0
    %1616 = vmatpush.bf16.msra.mxu0 0
    %1617 = vmatpush.bf16.msra.mxu0 %v1502
    %1618 = vmatmul.bf16.gmra.mxu0 %v1608
    %v1619 = vpop.f32.mrf.mxu0
    %v1620 = vadd.f32 %v1604, %v1619
    %v1621 = vpop.f32.mrf.mxu0
    %1622 = vdwg.mxu0
    %v1623 = vadd.f32 %v1620, %v179
    %v1624 = vxor.u32 %v1623, 2147483648
    %v1625 = vmul.f32 %v1624, 1.442695
    %v1626 = vpow.pop %v1625
    %v1627 = vadd.f32 %v1626, 1.0
    %v1628 = vrcp.pop %v1627
    %v1629 = vmul.f32 %v1627, %v1628
    %v1630 = vsub.f32 1.0, %v1629
    %v1631 = vmul.f32 %v1628, %v1630
    %v1632 = vadd.f32 %v1628, %v1631
    %vm1633 = vweird.f32 %v1627
    %vm1634 = vweird.f32 %v1628
    %vm1635 = vmor %vm1633, %vm1634
    %v1636 = vsel %vm1635, %v1628, %v1632
    %v1637 = vand.u32 2147483647, %v1627
    %vm1638 = vcmp.eq.f32.partialorder %v1637, 8.507059e+37
    %v1639 = vand.u32 %v1627, 2147483648
    %v1640 = vor.u32 1.1754944e-38, %v1639
    %v1641 = vsel %vm1638, %v1640, %v1636
    %v1642 = vmul.f32 1.0, %v1641
    %v1643 = vtanh.pop %v1623
    %v1644 = vmul.f32 %v1642, %v1552
    %1646 = vrot.lane.b32.xlu0 %v1643, 32
    %v1647 = vpop.permute.xlu0 %1646
    %v1649 = vmul.f32 %v1642, %v1647
    %1651 = vrot.lane.b32.xlu0 %v1649, 32
    %v1652 = vpop.permute.xlu0 %1651
    %v1654 = vadd.f32 %v1644, %v1652
    %v1655 = vtanh.pop %v1654
    %1657 = vrot.lane.b32.xlu0 %v1655, 32
    %v1658 = vpop.permute.xlu0 %1657
    %v1660 = vmul.f32 %v1642, %v1658
    %v1661 = vpack.c.bf16 %v1660, %v1660
    %1663 = vrot.lane.b32.xlu0 %v1661, 64
    %v1664 = vpop.permute.xlu0 %1663
    %v1666 = vsel %vm1481, %v1664, 0
    %1668 = vmatpush.bf16.msra.mxu0 0
    %1669 = vmatpush.bf16.msra.mxu0 0
    %1670 = vmatpush.bf16.msra.mxu0 0
    %1671 = vmatpush.bf16.msra.mxu0 0
    %1672 = vmatpush.bf16.msra.mxu0 0
    %1673 = vmatpush.bf16.msra.mxu0 0
    %1674 = vmatpush.bf16.msra.mxu0 %v1572
    %1675 = vmatpush.bf16.msra.mxu0 %v1571
    %1676 = vmatmul.bf16.gmra.mxu0 %v1666
    %v1677 = vpop.f32.mrf.mxu0
    %v1678 = vadd.f32 %v183, %v1677
    %v1679 = vpop.f32.mrf.mxu0
    %1680 = vdwg.mxu0
    %v1681 = vmax.f32 %v1678, -1.0
    %v1682 = vmin.f32 %v1681, 1.0
    %v1683 = vpack.c.bf16 %v1682, %v1682
    %1684 = vmatpush.bf16.msra.mxu0 0
    %1685 = vmatpush.bf16.msra.mxu0 0
    %1686 = vmatpush.bf16.msra.mxu0 0
    %1687 = vmatpush.bf16.msra.mxu0 0
    %1688 = vmatpush.bf16.msra.mxu0 0
    %1689 = vmatpush.bf16.msra.mxu0 0
    %1690 = vmatpush.bf16.msra.mxu0 %v1478
    %1691 = vmatpush.bf16.msra.mxu0 %v1477
    %1692 = vmatmul.bf16.gmra.mxu0 %v1666
    %v1693 = vpop.f32.mrf.mxu0
    %v1694 = vadd.f32 0.0, %v1693
    %v1695 = vpop.f32.mrf.mxu0
    %1696 = vdwg.mxu0
    %v1698 = vsel %vm207, %v1683, 0
    %1700 = vmatpush.bf16.msra.mxu0 0
    %1701 = vmatpush.bf16.msra.mxu0 0
    %1702 = vmatpush.bf16.msra.mxu0 0
    %1703 = vmatpush.bf16.msra.mxu0 0
    %1704 = vmatpush.bf16.msra.mxu0 0
    %1705 = vmatpush.bf16.msra.mxu0 0
    %1706 = vmatpush.bf16.msra.mxu0 0
    %1707 = vmatpush.bf16.msra.mxu0 %v1502
    %1708 = vmatmul.bf16.gmra.mxu0 %v1698
    %v1709 = vpop.f32.mrf.mxu0
    %v1710 = vadd.f32 %v1694, %v1709
    %v1711 = vpop.f32.mrf.mxu0
    %1712 = vdwg.mxu0
    %v1713 = vadd.f32 %v1710, %v179
    %v1714 = vxor.u32 %v1713, 2147483648
    %v1715 = vmul.f32 %v1714, 1.442695
    %v1716 = vpow.pop %v1715
    %v1717 = vadd.f32 %v1716, 1.0
    %v1718 = vrcp.pop %v1717
    %v1719 = vmul.f32 %v1717, %v1718
    %v1720 = vsub.f32 1.0, %v1719
    %v1721 = vmul.f32 %v1718, %v1720
    %v1722 = vadd.f32 %v1718, %v1721
    %vm1723 = vweird.f32 %v1717
    %vm1724 = vweird.f32 %v1718
    %vm1725 = vmor %vm1723, %vm1724
    %v1726 = vsel %vm1725, %v1718, %v1722
    %v1727 = vand.u32 2147483647, %v1717
    %vm1728 = vcmp.eq.f32.partialorder %v1727, 8.507059e+37
    %v1729 = vand.u32 %v1717, 2147483648
    %v1730 = vor.u32 1.1754944e-38, %v1729
    %v1731 = vsel %vm1728, %v1730, %v1726
    %v1732 = vmul.f32 1.0, %v1731
    %v1733 = vtanh.pop %v1713
    %v1734 = vmul.f32 %v1732, %v1654
    %1736 = vrot.lane.b32.xlu0 %v1733, 32
    %v1737 = vpop.permute.xlu0 %1736
    %v1739 = vmul.f32 %v1732, %v1737
    %1741 = vrot.lane.b32.xlu0 %v1739, 32
    %v1742 = vpop.permute.xlu0 %1741
    %v1744 = vadd.f32 %v1734, %v1742
    %v1745 = vtanh.pop %v1744
    %1747 = vrot.lane.b32.xlu0 %v1745, 32
    %v1748 = vpop.permute.xlu0 %1747
    %v1750 = vmul.f32 %v1732, %v1748
    %v1751 = vpack.c.bf16 %v1750, %v1750
    %1753 = vrot.lane.b32.xlu0 %v1751, 64
    %v1754 = vpop.permute.xlu0 %1753
    %v1756 = vsel %vm1481, %v1754, 0
    %1758 = vmatpush.bf16.msra.mxu0 0
    %1759 = vmatpush.bf16.msra.mxu0 0
    %1760 = vmatpush.bf16.msra.mxu0 0
    %1761 = vmatpush.bf16.msra.mxu0 0
    %1762 = vmatpush.bf16.msra.mxu0 0
    %1763 = vmatpush.bf16.msra.mxu0 0
    %1764 = vmatpush.bf16.msra.mxu0 %v1572
    %1765 = vmatpush.bf16.msra.mxu0 %v1571
    %1766 = vmatmul.bf16.gmra.mxu0 %v1756
    %v1767 = vpop.f32.mrf.mxu0
    %v1768 = vadd.f32 %v183, %v1767
    %v1769 = vpop.f32.mrf.mxu0
    %1770 = vdwg.mxu0
    %v1771 = vmax.f32 %v1768, -1.0
    %v1772 = vmin.f32 %v1771, 1.0
    %v1773 = vpack.c.bf16 %v1772, %v1772
    %1774 = vmatpush.bf16.msra.mxu0 0
    %1775 = vmatpush.bf16.msra.mxu0 0
    %1776 = vmatpush.bf16.msra.mxu0 0
    %1777 = vmatpush.bf16.msra.mxu0 0
    %1778 = vmatpush.bf16.msra.mxu0 0
    %1779 = vmatpush.bf16.msra.mxu0 0
    %1780 = vmatpush.bf16.msra.mxu0 %v1478
    %1781 = vmatpush.bf16.msra.mxu0 %v1477
    %1782 = vmatmul.bf16.gmra.mxu0 %v1756
    %v1783 = vpop.f32.mrf.mxu0
    %v1784 = vadd.f32 0.0, %v1783
    %v1785 = vpop.f32.mrf.mxu0
    %1786 = vdwg.mxu0
    %v1788 = vsel %vm207, %v1773, 0
    %1790 = vmatpush.bf16.msra.mxu0 0
    %1791 = vmatpush.bf16.msra.mxu0 0
    %1792 = vmatpush.bf16.msra.mxu0 0
    %1793 = vmatpush.bf16.msra.mxu0 0
    %1794 = vmatpush.bf16.msra.mxu0 0
    %1795 = vmatpush.bf16.msra.mxu0 0
    %1796 = vmatpush.bf16.msra.mxu0 0
    %1797 = vmatpush.bf16.msra.mxu0 %v1502
    %1798 = vmatmul.bf16.gmra.mxu0 %v1788
    %v1799 = vpop.f32.mrf.mxu0
    %v1800 = vadd.f32 %v1784, %v1799
    %v1801 = vpop.f32.mrf.mxu0
    %1802 = vdwg.mxu0
    %v1803 = vadd.f32 %v1800, %v179
    %v1804 = vxor.u32 %v1803, 2147483648
    %v1805 = vmul.f32 %v1804, 1.442695
    %v1806 = vpow.pop %v1805
    %v1807 = vadd.f32 %v1806, 1.0
    %v1808 = vrcp.pop %v1807
    %v1809 = vmul.f32 %v1807, %v1808
    %v1810 = vsub.f32 1.0, %v1809
    %v1811 = vmul.f32 %v1808, %v1810
    %v1812 = vadd.f32 %v1808, %v1811
    %vm1813 = vweird.f32 %v1807
    %vm1814 = vweird.f32 %v1808
    %vm1815 = vmor %vm1813, %vm1814
    %v1816 = vsel %vm1815, %v1808, %v1812
    %v1817 = vand.u32 2147483647, %v1807
    %vm1818 = vcmp.eq.f32.partialorder %v1817, 8.507059e+37
    %v1819 = vand.u32 %v1807, 2147483648
    %v1820 = vor.u32 1.1754944e-38, %v1819
    %v1821 = vsel %vm1818, %v1820, %v1816
    %v1822 = vmul.f32 1.0, %v1821
    %v1823 = vtanh.pop %v1803
    %v1824 = vmul.f32 %v1822, %v1744
    %1826 = vrot.lane.b32.xlu0 %v1823, 32
    %v1827 = vpop.permute.xlu0 %1826
    %v1829 = vmul.f32 %v1822, %v1827
    %1831 = vrot.lane.b32.xlu0 %v1829, 32
    %v1832 = vpop.permute.xlu0 %1831
    %v1834 = vadd.f32 %v1824, %v1832
    %v1835 = vtanh.pop %v1834
    %1837 = vrot.lane.b32.xlu0 %v1835, 32
    %v1838 = vpop.permute.xlu0 %1837
    %v1840 = vmul.f32 %v1822, %v1838
    %v1841 = vpack.c.bf16 %v1840, %v1840
    %1843 = vrot.lane.b32.xlu0 %v1841, 64
    %v1844 = vpop.permute.xlu0 %1843
    %v1846 = vsel %vm1481, %v1844, 0
    %1848 = vmatpush.bf16.msra.mxu0 0
    %1849 = vmatpush.bf16.msra.mxu0 0
    %1850 = vmatpush.bf16.msra.mxu0 0
    %1851 = vmatpush.bf16.msra.mxu0 0
    %1852 = vmatpush.bf16.msra.mxu0 0
    %1853 = vmatpush.bf16.msra.mxu0 0
    %1854 = vmatpush.bf16.msra.mxu0 %v1572
    %1855 = vmatpush.bf16.msra.mxu0 %v1571
    %1856 = vmatmul.bf16.gmra.mxu0 %v1846
    %v1857 = vpop.f32.mrf.mxu0
    %v1858 = vadd.f32 %v183, %v1857
    %v1859 = vpop.f32.mrf.mxu0
    %1860 = vdwg.mxu0
    %v1861 = vmax.f32 %v1858, -1.0
    %v1862 = vmin.f32 %v1861, 1.0
    %1864 = vrot.lane.b32.xlu0 %v1682, 16
    %v1865 = vpop.permute.xlu0 %1864
    %1868 = vrot.lane.b32.xlu0 %v1772, 32
    %v1869 = vpop.permute.xlu0 %1868
    %1872 = vrot.lane.b32.xlu0 %v1862, 48
    %v1873 = vpop.permute.xlu0 %1872
    %v1875 = vsel %vm207, %v1592, %v1865
    %v1876 = vsel %vm1481, %v1875, %v1869
    %vm1877 = vcmask 392192
    %v1878 = vsel %vm1877, %v1876, %v1873
    %vm1879 = vcmask 517120
    %1880 = vst.msk [vmem:[#allocation14] sm:$0x3] %vm1879, %v1878
    // Predicated region
    $region74: #{tpu_custom_call.1} parent=1 // pred_check
      _
    $region75: #{tpu_custom_call.1} parent=1 // pred_check_branch
      %1882 = sbr.rel (0) target = $region77
    $region76: #{tpu_custom_call.1} parent=1 // pred_region
      %1884 = vsyncadd [#allocation4], 0
      %s1886 = sshll.u32 [#allocation14], 4
      %s1887 = int_to_ptr.vmem [resolvable:$true] %s1886
      %s1888 = sshll.u32 %s11, 4
      %s1889 = int_to_ptr.hbm [resolvable:$true] %s1888
      %1891 = dma.vmem_to_hbm [thread:$0]  %s1887, 32, %s1889, [#allocation4]
    $region77: #{tpu_custom_call.1} parent=1 // pred_fallthru
      _
    // Predicated region
    $region78: #{tpu_custom_call.1} parent=1 // pred_check
      _
    $region79: #{tpu_custom_call.1} parent=1 // pred_check_branch
      %1893 = sbr.rel (0) target = $region81
    $region80: #{tpu_custom_call.1} parent=1 // pred_region
      %1895 = dma.done [#allocation4], 32
    $region81: #{tpu_custom_call.1} parent=1 // pred_fallthru
      _
    %1896 = vsyncpa [#allocation3], 1
    %1897 = vsyncpa [#allocation6], 1
    %1898 = vsyncpa [#allocation9], 1
    %1899 = vsyncpa [#allocation12], 1
    %1900 = vsyncpa [#allocation4], 1

</llo_original>
